<compile_context>
chip_gen: v6e
topology: v6e:2x2x1
jax: 0.10.0
libtpu: 0.0.40
codegen_flags: <defaults>
</compile_context>

<pallas_src>
import functools

import jax
import jax.numpy as jnp
from jax.experimental import pallas as pl
from jax.experimental.pallas import tpu as pltpu


def _round_up(x, m):
    return ((x + m - 1) // m) * m


# ----------------------------------------------------------------------------
# Pallas kernel: grid = (batch, L-tile).  One (TL, CP) tile per step.
# ----------------------------------------------------------------------------
def _resblock_kernel(x_ref, xh_ref, wa_ref, b1_ref, bsc_ref,
                     w2_ref, b2_ref, w3_ref, b3_ref, o_ref,
                     *, L, TL, CP, NT):
    t = pl.program_id(1)
    row0 = t * TL                          # global index of first row in tile

    x = x_ref[0]                           # (TL, CP)      bf16
    wa = wa_ref[...]                       # (CP, CP+C4P)  bf16 = [W1*s1 | Wsc*ssc]

    # ---- conv1 + shortcut: one wide MXU pass --------------------------------
    a = jnp.dot(x, wa, preferred_element_type=jnp.float32)        # (TL, CP+C4P)
    h1 = jnp.maximum(a[:, :CP] + b1_ref[...], 0.0)                # bn1 + relu
    # spill the shortcut straight into the output block (reuses its VMEM)
    o_ref[0] = (a[:, CP:] + bsc_ref[...]).astype(o_ref.dtype)

    # zero rows beyond the real sequence length (traced only when L % TL != 0)
    if L % TL:
        rows = jax.lax.broadcasted_iota(jnp.int32, (TL, 1), 0) + row0
        h1 = jnp.where(rows < L, h1, 0.0)

    # ---- conv2 (k=3, pad=1): +-1-row-shifted LHS, 3 accumulating MXU passes -
    h1_prev = pltpu.roll(h1, shift=1, axis=0)       # h1_prev[l] = h1[l-1]
    h1_next = pltpu.roll(h1, shift=TL - 1, axis=0)  # h1_next[l] = h1[l+1]
    ridx = jax.lax.broadcasted_iota(jnp.int32, (TL, 1), 0)

    if NT > 1:
        # halo x rows (row0-1, row0+TL) -> halo h1 rows; zero at sequence edges
        xh = xh_ref[0, 0]                                            # (2, CP)
        h1h = jnp.maximum(
            jnp.dot(xh, wa[:, :CP], preferred_element_type=jnp.float32)
            + b1_ref[...], 0.0)
        left = jnp.where(row0 > 0, h1h[0:1], 0.0)
        right = jnp.where(row0 + TL < L, h1h[1:2], 0.0)
    else:
        left = 0.0                      # single tile: conv zero padding
        right = 0.0
    h1_prev = jnp.where(ridx == 0, left, h1_prev)
    h1_next = jnp.where(ridx == TL - 1, right, h1_next)

    y = jnp.dot(h1_prev.astype(jnp.bfloat16), w2_ref[0],
                preferred_element_type=jnp.float32)
    y = y + jnp.dot(h1.astype(jnp.bfloat16), w2_ref[1],
                    preferred_element_type=jnp.float32)
    y = y + jnp.dot(h1_next.astype(jnp.bfloat16), w2_ref[2],
                    preferred_element_type=jnp.float32)
    h2 = jnp.maximum(y + b2_ref[...], 0.0)                        # bn2 + relu

    # ---- conv3 + bn3 (dropout = identity in eval) + residual + relu ---------
    h3 = jnp.dot(h2.astype(jnp.bfloat16), w3_ref[...],
                 preferred_element_type=jnp.float32) + b3_ref[...]
    sc = o_ref[0].astype(jnp.float32)                 # read back spilled shortcut
    o_ref[0] = jnp.maximum(h3 + sc, 0.0).astype(o_ref.dtype)


# ----------------------------------------------------------------------------
# Parameter folding: BN scale into weights, BN shift + conv bias into shifts.
# ----------------------------------------------------------------------------
def _fold_and_pad(p, CP, C4P, eps=1e-5):
    def bn_fold(conv_b, bn):
        g, b, m, v = bn
        s = g / jnp.sqrt(v + eps)
        return s, (conv_b - m) * s + b

    s1, sh1 = bn_fold(p["conv1_b"], p["bn1"])
    s2, sh2 = bn_fold(p["conv2_b"], p["bn2"])
    s3, sh3 = bn_fold(p["conv3_b"], p["bn3"])
    ssc, shsc = bn_fold(p["sc_b"], p["bn_sc"])

    w1 = p["conv1_w"][:, :, 0].T * s1                      # (C, C)
    wsc = p["sc_w"][:, :, 0].T * ssc                       # (C, 4C)
    w2k = [p["conv2_w"][:, :, k].T * s2 for k in range(3)]
    w3 = p["conv3_w"][:, :, 0].T * s3                      # (C, 4C)

    def pad2(w, r, c):
        return jnp.zeros((r, c), jnp.float32).at[:w.shape[0], :w.shape[1]].set(w)

    def padrow(v, c):
        return jnp.zeros((1, c), jnp.float32).at[0, :v.shape[0]].set(v)

    wa = jnp.concatenate([pad2(w1, CP, CP), pad2(wsc, CP, C4P)],
                         axis=1).astype(jnp.bfloat16)                 # (CP, CP+C4P)
    w2s = jnp.stack([pad2(w2k[0], CP, CP), pad2(w2k[1], CP, CP),
                     pad2(w2k[2], CP, CP)]).astype(jnp.bfloat16)      # (3, CP, CP)
    w3p = pad2(w3, CP, C4P).astype(jnp.bfloat16)                      # (CP, C4P)

    return (wa, padrow(sh1, CP), padrow(shsc, C4P),
            w2s, padrow(sh2, CP), w3p, padrow(sh3, C4P))


# ----------------------------------------------------------------------------
# VMEM budgeting and L-tile selection.
# ----------------------------------------------------------------------------
def _vmem_caps():
    try:
        cap = int(getattr(pltpu.get_tpu_info(), "vmem_capacity_bytes",
                          64 * 1024 * 1024))
    except Exception:
        cap = 64 * 1024 * 1024          # assume smallest (v7x-like) if unknown
    vmem_limit = min(int(cap * 0.75), 96 * 1024 * 1024)   # v5e/v6e ~96M, v7x ~48M
    tl_budget = min(int(cap * 0.60), 80 * 1024 * 1024)
    return vmem_limit, tl_budget


def _choose_tl(L, CP, C4P, budget, requested):
    # single-buffered weights + biases + halo + slack
    fixed = ((CP * (CP + C4P) + 3 * CP * CP + CP * C4P) * 2
             + (2 * CP + 2 * C4P) * 4 + 4 * CP + (2 << 20))
    # conservative per-row live bytes: double-buffered bf16 I/O + f32 temporaries
    per_row = (2 * 2 * CP * 2           # x blocks (2 buffers, bf16)
               + 2 * 2 * C4P * 2        # out blocks (2 buffers, bf16)
               + (CP + C4P) * 4         # conv1+shortcut accumulator (f32)
               + 3 * CP * 4             # h1 + two rolled copies (f32)
               + 3 * CP * 2             # bf16 casts of the conv2 LHS
               + CP * 4                 # conv2 accumulator (f32)
               + C4P * 4)               # h3 (f32)
    tl = max(8, min((budget - fixed) // per_row, 1024))
    tl = max(8, (tl // 8) * 8)
    tl = min(tl, _round_up(L, 8))
    if requested is not None:
        tl = min(tl, _round_up(max(int(requested), 8), 8))
    return max(tl, 8)


# ----------------------------------------------------------------------------
# Wrapper: layout padding, L tiling, halo rows, pallas_call.
# ----------------------------------------------------------------------------
def residual_block_1d_pallas(x_nlc, torch_params, *, tl=None):
    """x_nlc: (B, L, C).  Returns (B, L, 4C) bfloat16."""
    B, L, C = x_nlc.shape
    C4 = 4 * C
    CP = _round_up(C, 128)
    C4P = _round_up(C4, 128)

    vmem_limit, tl_budget = _vmem_caps()
    TL = _choose_tl(L, CP, C4P, tl_budget, tl)
    L_pad = _round_up(L, TL)
    NT = L_pad // TL
    # v7x has 2 TensorCores: expose >= 2 grid steps when the shapes allow it.
    if B * NT < 2 and L > 8:
        TL = max(8, _round_up((L + 1) // 2, 8))
        L_pad = _round_up(L, TL)
        NT = L_pad // TL

    (wa, b1, bsc, w2s, b2, w3p, b3) = _fold_and_pad(torch_params, CP, C4P)

    # input as (B, L_pad, CP) bf16; skip the pad/copy pass when shapes line up
    if C == CP and L_pad == L:
        xp = x_nlc.astype(jnp.bfloat16)
    else:
        xp = jnp.zeros((B, L_pad, CP), jnp.bfloat16)
        xp = xp.at[:, :L, :C].set(x_nlc.astype(jnp.bfloat16))

    # per-tile halo rows (t*TL - 1, t*TL + TL); edge cases masked in-kernel
    starts = jnp.arange(NT, dtype=jnp.int32) * TL
    halo_idx = jnp.stack([jnp.clip(starts - 1, 0, L_pad - 1),
                          jnp.clip(starts + TL, 0, L_pad - 1)], axis=1)
    x_halo = xp[:, halo_idx, :]                                  # (B, NT, 2, CP)

    kernel = functools.partial(_resblock_kernel, L=L, TL=TL, CP=CP, NT=NT)

    flops = int(2 * B * L_pad * CP * ((CP + C4P) + 3 * CP + C4P))
    bytes_accessed = int((xp.size + x_halo.size) * 2
                         + (wa.size + w2s.size + w3p.size) * 2
                         + (b1.size + b2.size + b3.size + bsc.size) * 4
                         + B * L_pad * C4P * 2)

    def run(single_buffer_weights):
        def whole(shape):
            idx = lambda b, t, _n=len(shape): (0,) * _n
            if single_buffer_weights:
                return pl.BlockSpec(shape, idx, pipeline_mode=pl.Buffered(1))
            return pl.BlockSpec(shape, idx)

        return pl.pallas_call(
            kernel,
            out_shape=jax.ShapeDtypeStruct((B, L_pad, C4P), jnp.bfloat16),
            grid_spec=pltpu.PrefetchScalarGridSpec(
                num_scalar_prefetch=0,
                grid=(B, NT),
                in_specs=[
                    pl.BlockSpec((1, TL, CP), lambda b, t: (b, t, 0)),       # x tile
                    pl.BlockSpec((1, 1, 2, CP), lambda b, t: (b, t, 0, 0)),  # halo
                    whole(wa.shape), whole(b1.shape), whole(bsc.shape),
                    whole(w2s.shape), whole(b2.shape),
                    whole(w3p.shape), whole(b3.shape),
                ],
                out_specs=pl.BlockSpec((1, TL, C4P), lambda b, t: (b, t, 0)),
            ),
            compiler_params=pltpu.CompilerParams(
                dimension_semantics=("parallel", "parallel"),
                vmem_limit_bytes=int(vmem_limit)),
            cost_estimate=pl.CostEstimate(flops=flops, transcendentals=0,
                                          bytes_accessed=bytes_accessed),
        )(xp, x_halo, wa, b1, bsc, w2s, b2, w3p, b3)

    use_single = hasattr(pl, "Buffered")
    try:
        out = run(use_single)
    except Exception:
        # pipeline_mode / Buffered(1) unsupported -> default double buffering
        if not use_single:
            raise
        out = run(False)

    if C4 == C4P and L_pad == L:
        return out
    return out[:, :L, :C4]


# ----------------------------------------------------------------------------
# Deterministic PyTorch-layout parameters.
# ----------------------------------------------------------------------------
def make_params(key, C):
    C4 = 4 * C
    ks = iter(jax.random.split(key, 32))
    nrm = lambda shape, s=0.1: s * jax.random.normal(next(ks), shape, jnp.float32)

    def bn(c):
        gamma = 1.0 + nrm((c,))
        beta = nrm((c,))
        mean = nrm((c,))
        var = 0.5 + jnp.abs(jax.random.normal(next(ks), (c,), jnp.float32))
        return (gamma, beta, mean, var)

    return dict(
        conv1_w=nrm((C, C, 1)), conv1_b=nrm((C,)), bn1=bn(C),
        conv2_w=nrm((C, C, 3)), conv2_b=nrm((C,)), bn2=bn(C),
        conv3_w=nrm((C4, C, 1)), conv3_b=nrm((C4,)), bn3=bn(C4),
        sc_w=nrm((C4, C, 1)), sc_b=nrm((C4,)), bn_sc=bn(C4),
    )


# ----------------------------------------------------------------------------
# Pure-JAX f32 reference (eval-mode BN, dropout = identity).
# ----------------------------------------------------------------------------
def reference(x_nlc, p, eps=1e-5):
    def bn(y, bn_p):
        g, b, m, v = bn_p
        s = g / jnp.sqrt(v + eps)
        return y * s + (b - m * s)

    h = jnp.einsum("blc,cd->bld", x_nlc, p["conv1_w"][:, :, 0].T) + p["conv1_b"]
    h = jnp.maximum(bn(h, p["bn1"]), 0.0)

    w2 = jnp.transpose(p["conv2_w"], (2, 1, 0))          # (k, Cin, Cout)
    zp = jnp.zeros_like(h[:, :1, :])
    prev = jnp.concatenate([zp, h[:, :-1, :]], axis=1)
    nxt = jnp.concatenate([h[:, 1:, :], zp], axis=1)
    h = (jnp.einsum("blc,cd->bld", prev, w2[0])
         + jnp.einsum("blc,cd->bld", h, w2[1])
         + jnp.einsum("blc,cd->bld", nxt, w2[2])) + p["conv2_b"]
    h = jnp.maximum(bn(h, p["bn2"]), 0.0)

    h = bn(jnp.einsum("blc,cd->bld", h, p["conv3_w"][:, :, 0].T) + p["conv3_b"],
           p["bn3"])

    s = bn(jnp.einsum("blc,cd->bld", x_nlc, p["sc_w"][:, :, 0].T) + p["sc_b"],
           p["bn_sc"])
    return jnp.maximum(h + s, 0.0)


if __name__ == "__main__":
    key = jax.random.PRNGKey(0)
    kx, kp = jax.random.split(key)

    B, C = 2, 8                             # batch, filters
    params = make_params(kp, C)

    def check(L, tl):
        x_ncl = jax.random.normal(jax.random.fold_in(kx, L), (B, C, L),
                                  jnp.float32)                # PyTorch NCL input
        x_nlc = jnp.transpose(x_ncl, (0, 2, 1))               # NCL -> NLC
        out_nlc = residual_block_1d_pallas(x_nlc, params, tl=tl)
        out_ncl = jnp.transpose(out_nlc, (0, 2, 1)).astype(jnp.float32)
        jax.block_until_ready(out_ncl)
        ref_ncl = jnp.transpose(reference(x_nlc, params), (0, 2, 1))
        assert out_ncl.shape == (B, 4 * C, L)
        err = float(jnp.max(jnp.abs(out_ncl - ref_ncl)))
        assert jnp.allclose(out_ncl, ref_ncl, atol=2e-2, rtol=2e-2), (L, tl, err)

    check(L=16, tl=8)    # two L-tiles per batch element (halo path)
    check(L=13, tl=8)    # ragged L (last-tile row masking + halo path)
    check(L=8, tl=8)     # single L-tile (zero-pad boundary path)
    print("KERNEL_OK")
</pallas_src>

<mosaic_0001>
module attributes {stable_mosaic.version = 11 : i64} {
  func.func @_resblock_kernel(%arg0: i32, %arg1: i32, %arg2: memref<1x8x128xbf16, #tpu.memory_space<vmem>>, %arg3: memref<1x1x2x128xbf16, #tpu.memory_space<vmem>>, %arg4: memref<128x256xbf16, #tpu.memory_space<vmem>>, %arg5: memref<1x128xf32, #tpu.memory_space<vmem>>, %arg6: memref<1x128xf32, #tpu.memory_space<vmem>>, %arg7: memref<3x128x128xbf16, #tpu.memory_space<vmem>>, %arg8: memref<1x128xf32, #tpu.memory_space<vmem>>, %arg9: memref<128x128xbf16, #tpu.memory_space<vmem>>, %arg10: memref<1x128xf32, #tpu.memory_space<vmem>>, %arg11: memref<1x8x128xbf16, #tpu.memory_space<vmem>>) attributes {dimension_semantics = [#tpu.dimension_semantics<parallel>, #tpu.dimension_semantics<parallel>], iteration_bounds = array<i64: 2, 2>, scalar_prefetch = 0 : i64, scratch_operands = 0 : i64, tpu.core_type = #tpu.core_type<tc>, window_params = [{transform_indices = @transform_0, window_bounds = array<i64: 1, 8, 128>}, {transform_indices = @transform_1, window_bounds = array<i64: 1, 1, 2, 128>}, {pipeline_mode = #tpu.pipeline_mode<synchronous>, transform_indices = @transform_2, window_bounds = array<i64: 128, 256>}, {pipeline_mode = #tpu.pipeline_mode<synchronous>, transform_indices = @transform_3, window_bounds = array<i64: 1, 128>}, {pipeline_mode = #tpu.pipeline_mode<synchronous>, transform_indices = @transform_4, window_bounds = array<i64: 1, 128>}, {pipeline_mode = #tpu.pipeline_mode<synchronous>, transform_indices = @transform_5, window_bounds = array<i64: 3, 128, 128>}, {pipeline_mode = #tpu.pipeline_mode<synchronous>, transform_indices = @transform_6, window_bounds = array<i64: 1, 128>}, {pipeline_mode = #tpu.pipeline_mode<synchronous>, transform_indices = @transform_7, window_bounds = array<i64: 128, 128>}, {pipeline_mode = #tpu.pipeline_mode<synchronous>, transform_indices = @transform_8, window_bounds = array<i64: 1, 128>}, {transform_indices = @transform_9, window_bounds = array<i64: 1, 8, 128>}]} {
    %c8_i32 = arith.constant 8 : i32
    %0 = arith.muli %arg1, %c8_i32 : i32
    %c0 = arith.constant 0 : index
    %c0_0 = arith.constant 0 : index
    %c0_1 = arith.constant 0 : index
    %1 = vector.load %arg2[%c0, %c0_0, %c0_1] : memref<1x8x128xbf16, #tpu.memory_space<vmem>>, vector<1x8x128xbf16>
    %2 = vector.shape_cast %1 : vector<1x8x128xbf16> to vector<8x128xbf16>
    %c0_2 = arith.constant 0 : index
    %c0_3 = arith.constant 0 : index
    %3 = vector.load %arg4[%c0_2, %c0_3] : memref<128x256xbf16, #tpu.memory_space<vmem>>, vector<128x256xbf16>
    %cst = arith.constant dense<0.000000e+00> : vector<8x256xf32>
    %4 = tpu.matmul %2, %3, %cst {dimension_numbers = #tpu.dot_dimension_numbers<[1], [0], [0], [1], [0, 0, 1, 1], [], []>} : vector<8x128xbf16>, vector<128x256xbf16>, vector<8x256xf32> -> vector<8x256xf32>
    %5 = vector.extract_strided_slice %4 {offsets = [0, 0], sizes = [8, 128], strides = [1, 1]} : vector<8x256xf32> to vector<8x128xf32>
    %c0_4 = arith.constant 0 : index
    %c0_5 = arith.constant 0 : index
    %6 = vector.load %arg5[%c0_4, %c0_5] : memref<1x128xf32, #tpu.memory_space<vmem>>, vector<1x128xf32>
    %7 = vector.broadcast %6 : vector<1x128xf32> to vector<8x128xf32>
    %8 = arith.addf %5, %7 : vector<8x128xf32>
    %cst_6 = arith.constant 0.000000e+00 : f32
    %9 = vector.broadcast %cst_6 : f32 to vector<8x128xf32>
    %10 = arith.maximumf %8, %9 : vector<8x128xf32>
    %11 = vector.extract_strided_slice %4 {offsets = [0, 128], sizes = [8, 128], strides = [1, 1]} : vector<8x256xf32> to vector<8x128xf32>
    %c0_7 = arith.constant 0 : index
    %c0_8 = arith.constant 0 : index
    %12 = vector.load %arg6[%c0_7, %c0_8] : memref<1x128xf32, #tpu.memory_space<vmem>>, vector<1x128xf32>
    %13 = vector.broadcast %12 : vector<1x128xf32> to vector<8x128xf32>
    %14 = arith.addf %11, %13 : vector<8x128xf32>
    %15 = arith.truncf %14 : vector<8x128xf32> to vector<8x128xbf16>
    %c0_9 = arith.constant 0 : index
    %c0_10 = arith.constant 0 : index
    %c0_11 = arith.constant 0 : index
    %16 = vector.load %arg11[%c0_9, %c0_10, %c0_11] : memref<1x8x128xbf16, #tpu.memory_space<vmem>>, vector<1x8x128xbf16>
    %17 = vector.shape_cast %16 : vector<1x8x128xbf16> to vector<8x128xbf16>
    %18 = vector.shape_cast %15 : vector<8x128xbf16> to vector<1x8x128xbf16>
    tpu.vector_store %arg11[%c0_9, %c0_10, %c0_11], %18 {strides = array<i32>} : memref<1x8x128xbf16, #tpu.memory_space<vmem>>, vector<1x8x128xbf16>,
    %c1_i32 = arith.constant 1 : i32
    %19 = tpu.dynamic_rotate %10 by %c1_i32 dim 0 : vector<8x128xf32>, i32 -> vector<8x128xf32>
    %c7_i32 = arith.constant 7 : i32
    %20 = tpu.dynamic_rotate %10 by %c7_i32 dim 0 : vector<8x128xf32>, i32 -> vector<8x128xf32>
    %21 = tpu.iota {dimensions = array<i32: 0>} : vector<8x1xi32>
    %c0_12 = arith.constant 0 : index
    %c0_13 = arith.constant 0 : index
    %c0_14 = arith.constant 0 : index
    %c0_15 = arith.constant 0 : index
    %22 = vector.load %arg3[%c0_12, %c0_13, %c0_14, %c0_15] : memref<1x1x2x128xbf16, #tpu.memory_space<vmem>>, vector<1x1x2x128xbf16>
    %23 = vector.shape_cast %22 : vector<1x1x2x128xbf16> to vector<2x128xbf16>
    %24 = vector.extract_strided_slice %3 {offsets = [0, 0], sizes = [128, 128], strides = [1, 1]} : vector<128x256xbf16> to vector<128x128xbf16>
    %cst_16 = arith.constant dense<0.000000e+00> : vector<2x128xf32>
    %25 = tpu.matmul %23, %24, %cst_16 {dimension_numbers = #tpu.dot_dimension_numbers<[1], [0], [0], [1], [0, 0, 1, 1], [], []>} : vector<2x128xbf16>, vector<128x128xbf16>, vector<2x128xf32> -> vector<2x128xf32>
    %c0_17 = arith.constant 0 : index
    %c0_18 = arith.constant 0 : index
    %26 = vector.load %arg5[%c0_17, %c0_18] : memref<1x128xf32, #tpu.memory_space<vmem>>, vector<1x128xf32>
    %27 = vector.broadcast %26 : vector<1x128xf32> to vector<2x128xf32>
    %28 = arith.addf %25, %27 : vector<2x128xf32>
    %cst_19 = arith.constant 0.000000e+00 : f32
    %29 = vector.broadcast %cst_19 : f32 to vector<2x128xf32>
    %30 = arith.maximumf %28, %29 : vector<2x128xf32>
    %c0_i32 = arith.constant 0 : i32
    %31 = arith.cmpi sgt, %0, %c0_i32 : i32
    %32 = vector.extract_strided_slice %30 {offsets = [0, 0], sizes = [1, 128], strides = [1, 1]} : vector<2x128xf32> to vector<1x128xf32>
    %cst_20 = arith.constant 0.000000e+00 : f32
    %33 = vector.broadcast %cst_20 : f32 to vector<1x128xf32>
    %34 = arith.select %31, %32, %33 : vector<1x128xf32>
    %c8_i32_21 = arith.constant 8 : i32
    %35 = arith.addi %0, %c8_i32_21 : i32
    %c16_i32 = arith.constant 16 : i32
    %36 = arith.cmpi slt, %35, %c16_i32 : i32
    %37 = vector.extract_strided_slice %30 {offsets = [1, 0], sizes = [1, 128], strides = [1, 1]} : vector<2x128xf32> to vector<1x128xf32>
    %cst_22 = arith.constant 0.000000e+00 : f32
    %38 = vector.broadcast %cst_22 : f32 to vector<1x128xf32>
    %39 = arith.select %36, %37, %38 : vector<1x128xf32>
    %c0_i32_23 = arith.constant 0 : i32
    %40 = vector.broadcast %c0_i32_23 : i32 to vector<8x1xi32>
    %41 = arith.cmpi eq, %21, %40 : vector<8x1xi32>
    %42 = vector.shape_cast %41 : vector<8x1xi1> to vector<8x1xi1>
    %43 = vector.broadcast %42 : vector<8x1xi1> to vector<8x128xi1>
    %44 = vector.shape_cast %34 : vector<1x128xf32> to vector<1x128xf32>
    %45 = vector.broadcast %44 : vector<1x128xf32> to vector<8x128xf32>
    %46 = arith.select %43, %45, %19 : vector<8x128xi1>, vector<8x128xf32>
    %c7_i32_24 = arith.constant 7 : i32
    %47 = vector.broadcast %c7_i32_24 : i32 to vector<8x1xi32>
    %48 = arith.cmpi eq, %21, %47 : vector<8x1xi32>
    %49 = vector.shape_cast %48 : vector<8x1xi1> to vector<8x1xi1>
    %50 = vector.broadcast %49 : vector<8x1xi1> to vector<8x128xi1>
    %51 = vector.shape_cast %39 : vector<1x128xf32> to vector<1x128xf32>
    %52 = vector.broadcast %51 : vector<1x128xf32> to vector<8x128xf32>
    %53 = arith.select %50, %52, %20 : vector<8x128xi1>, vector<8x128xf32>
    %54 = arith.truncf %46 : vector<8x128xf32> to vector<8x128xbf16>
    %c0_25 = arith.constant 0 : index
    %c0_26 = arith.constant 0 : index
    %c0_27 = arith.constant 0 : index
    %55 = vector.load %arg7[%c0_25, %c0_26, %c0_27] : memref<3x128x128xbf16, #tpu.memory_space<vmem>>, vector<1x128x128xbf16>
    %56 = vector.shape_cast %55 : vector<1x128x128xbf16> to vector<128x128xbf16>
    %cst_28 = arith.constant dense<0.000000e+00> : vector<8x128xf32>
    %57 = tpu.matmul %54, %56, %cst_28 {dimension_numbers = #tpu.dot_dimension_numbers<[1], [0], [0], [1], [0, 0, 1, 1], [], []>} : vector<8x128xbf16>, vector<128x128xbf16>, vector<8x128xf32> -> vector<8x128xf32>
    %58 = arith.truncf %10 : vector<8x128xf32> to vector<8x128xbf16>
    %c1 = arith.constant 1 : index
    %c0_29 = arith.constant 0 : index
    %c0_30 = arith.constant 0 : index
    %59 = vector.load %arg7[%c1, %c0_29, %c0_30] : memref<3x128x128xbf16, #tpu.memory_space<vmem>>, vector<1x128x128xbf16>
    %60 = vector.shape_cast %59 : vector<1x128x128xbf16> to vector<128x128xbf16>
    %cst_31 = arith.constant dense<0.000000e+00> : vector<8x128xf32>
    %61 = tpu.matmul %58, %60, %cst_31 {dimension_numbers = #tpu.dot_dimension_numbers<[1], [0], [0], [1], [0, 0, 1, 1], [], []>} : vector<8x128xbf16>, vector<128x128xbf16>, vector<8x128xf32> -> vector<8x128xf32>
    %62 = arith.addf %57, %61 : vector<8x128xf32>
    %63 = arith.truncf %53 : vector<8x128xf32> to vector<8x128xbf16>
    %c2 = arith.constant 2 : index
    %c0_32 = arith.constant 0 : index
    %c0_33 = arith.constant 0 : index
    %64 = vector.load %arg7[%c2, %c0_32, %c0_33] : memref<3x128x128xbf16, #tpu.memory_space<vmem>>, vector<1x128x128xbf16>
    %65 = vector.shape_cast %64 : vector<1x128x128xbf16> to vector<128x128xbf16>
    %cst_34 = arith.constant dense<0.000000e+00> : vector<8x128xf32>
    %66 = tpu.matmul %63, %65, %cst_34 {dimension_numbers = #tpu.dot_dimension_numbers<[1], [0], [0], [1], [0, 0, 1, 1], [], []>} : vector<8x128xbf16>, vector<128x128xbf16>, vector<8x128xf32> -> vector<8x128xf32>
    %67 = arith.addf %62, %66 : vector<8x128xf32>
    %c0_35 = arith.constant 0 : index
    %c0_36 = arith.constant 0 : index
    %68 = vector.load %arg8[%c0_35, %c0_36] : memref<1x128xf32, #tpu.memory_space<vmem>>, vector<1x128xf32>
    %69 = vector.broadcast %68 : vector<1x128xf32> to vector<8x128xf32>
    %70 = arith.addf %67, %69 : vector<8x128xf32>
    %cst_37 = arith.constant 0.000000e+00 : f32
    %71 = vector.broadcast %cst_37 : f32 to vector<8x128xf32>
    %72 = arith.maximumf %70, %71 : vector<8x128xf32>
    %73 = arith.truncf %72 : vector<8x128xf32> to vector<8x128xbf16>
    %c0_38 = arith.constant 0 : index
    %c0_39 = arith.constant 0 : index
    %74 = vector.load %arg9[%c0_38, %c0_39] : memref<128x128xbf16, #tpu.memory_space<vmem>>, vector<128x128xbf16>
    %cst_40 = arith.constant dense<0.000000e+00> : vector<8x128xf32>
    %75 = tpu.matmul %73, %74, %cst_40 {dimension_numbers = #tpu.dot_dimension_numbers<[1], [0], [0], [1], [0, 0, 1, 1], [], []>} : vector<8x128xbf16>, vector<128x128xbf16>, vector<8x128xf32> -> vector<8x128xf32>
    %c0_41 = arith.constant 0 : index
    %c0_42 = arith.constant 0 : index
    %76 = vector.load %arg10[%c0_41, %c0_42] : memref<1x128xf32, #tpu.memory_space<vmem>>, vector<1x128xf32>
    %77 = vector.broadcast %76 : vector<1x128xf32> to vector<8x128xf32>
    %78 = arith.addf %75, %77 : vector<8x128xf32>
    %c0_43 = arith.constant 0 : index
    %c0_44 = arith.constant 0 : index
    %c0_45 = arith.constant 0 : index
    %79 = vector.load %arg11[%c0_43, %c0_44, %c0_45] : memref<1x8x128xbf16, #tpu.memory_space<vmem>>, vector<1x8x128xbf16>
    %80 = vector.shape_cast %79 : vector<1x8x128xbf16> to vector<8x128xbf16>
    %81 = arith.extf %80 : vector<8x128xbf16> to vector<8x128xf32>
    %82 = arith.addf %78, %81 : vector<8x128xf32>
    %cst_46 = arith.constant 0.000000e+00 : f32
    %83 = vector.broadcast %cst_46 : f32 to vector<8x128xf32>
    %84 = arith.maximumf %82, %83 : vector<8x128xf32>
    %85 = arith.truncf %84 : vector<8x128xf32> to vector<8x128xbf16>
    %c0_47 = arith.constant 0 : index
    %c0_48 = arith.constant 0 : index
    %c0_49 = arith.constant 0 : index
    %86 = vector.load %arg11[%c0_47, %c0_48, %c0_49] : memref<1x8x128xbf16, #tpu.memory_space<vmem>>, vector<1x8x128xbf16>
    %87 = vector.shape_cast %86 : vector<1x8x128xbf16> to vector<8x128xbf16>
    %88 = vector.shape_cast %85 : vector<8x128xbf16> to vector<1x8x128xbf16>
    tpu.vector_store %arg11[%c0_47, %c0_48, %c0_49], %88 {strides = array<i32>} : memref<1x8x128xbf16, #tpu.memory_space<vmem>>, vector<1x8x128xbf16>,
    return
  }
  func.func @transform_0(%arg0: i32, %arg1: i32) -> (i32, i32, i32) {
    %c0_i32 = arith.constant 0 : i32
    %c0_i32_0 = arith.constant 0 : i32
    return %arg0, %arg1, %c0_i32 : i32, i32, i32
  }
  func.func @transform_1(%arg0: i32, %arg1: i32) -> (i32, i32, i32, i32) {
    %c0_i32 = arith.constant 0 : i32
    %c0_i32_0 = arith.constant 0 : i32
    %c0_i32_1 = arith.constant 0 : i32
    return %arg0, %arg1, %c0_i32, %c0_i32_0 : i32, i32, i32, i32
  }
  func.func @transform_2(%arg0: i32, %arg1: i32) -> (i32, i32) {
    %c0_i32 = arith.constant 0 : i32
    %c0_i32_0 = arith.constant 0 : i32
    %c0_i32_1 = arith.constant 0 : i32
    return %c0_i32, %c0_i32_0 : i32, i32
  }
  func.func @transform_3(%arg0: i32, %arg1: i32) -> (i32, i32) {
    %c0_i32 = arith.constant 0 : i32
    %c0_i32_0 = arith.constant 0 : i32
    %c0_i32_1 = arith.constant 0 : i32
    return %c0_i32, %c0_i32_0 : i32, i32
  }
  func.func @transform_4(%arg0: i32, %arg1: i32) -> (i32, i32) {
    %c0_i32 = arith.constant 0 : i32
    %c0_i32_0 = arith.constant 0 : i32
    %c0_i32_1 = arith.constant 0 : i32
    return %c0_i32, %c0_i32_0 : i32, i32
  }
  func.func @transform_5(%arg0: i32, %arg1: i32) -> (i32, i32, i32) {
    %c0_i32 = arith.constant 0 : i32
    %c0_i32_0 = arith.constant 0 : i32
    %c0_i32_1 = arith.constant 0 : i32
    %c0_i32_2 = arith.constant 0 : i32
    return %c0_i32, %c0_i32_0, %c0_i32_1 : i32, i32, i32
  }
  func.func @transform_6(%arg0: i32, %arg1: i32) -> (i32, i32) {
    %c0_i32 = arith.constant 0 : i32
    %c0_i32_0 = arith.constant 0 : i32
    %c0_i32_1 = arith.constant 0 : i32
    return %c0_i32, %c0_i32_0 : i32, i32
  }
  func.func @transform_7(%arg0: i32, %arg1: i32) -> (i32, i32) {
    %c0_i32 = arith.constant 0 : i32
    %c0_i32_0 = arith.constant 0 : i32
    %c0_i32_1 = arith.constant 0 : i32
    return %c0_i32, %c0_i32_0 : i32, i32
  }
  func.func @transform_8(%arg0: i32, %arg1: i32) -> (i32, i32) {
    %c0_i32 = arith.constant 0 : i32
    %c0_i32_0 = arith.constant 0 : i32
    %c0_i32_1 = arith.constant 0 : i32
    return %c0_i32, %c0_i32_0 : i32, i32
  }
  func.func @transform_9(%arg0: i32, %arg1: i32) -> (i32, i32, i32) {
    %c0_i32 = arith.constant 0 : i32
    %c0_i32_0 = arith.constant 0 : i32
    return %arg0, %arg1, %c0_i32 : i32, i32, i32
  }
}

module attributes {stable_mosaic.version = 11 : i64} {
  func.func @_resblock_kernel(%arg0: i32, %arg1: i32, %arg2: memref<1x8x128xbf16, #tpu.memory_space<vmem>>, %arg3: memref<1x1x2x128xbf16, #tpu.memory_space<vmem>>, %arg4: memref<128x256xbf16, #tpu.memory_space<vmem>>, %arg5: memref<1x128xf32, #tpu.memory_space<vmem>>, %arg6: memref<1x128xf32, #tpu.memory_space<vmem>>, %arg7: memref<3x128x128xbf16, #tpu.memory_space<vmem>>, %arg8: memref<1x128xf32, #tpu.memory_space<vmem>>, %arg9: memref<128x128xbf16, #tpu.memory_space<vmem>>, %arg10: memref<1x128xf32, #tpu.memory_space<vmem>>, %arg11: memref<1x8x128xbf16, #tpu.memory_space<vmem>>) attributes {dimension_semantics = [#tpu.dimension_semantics<parallel>, #tpu.dimension_semantics<parallel>], iteration_bounds = array<i64: 2, 2>, scalar_prefetch = 0 : i64, scratch_operands = 0 : i64, tpu.core_type = #tpu.core_type<tc>, window_params = [{transform_indices = @transform_0, window_bounds = array<i64: 1, 8, 128>}, {transform_indices = @transform_1, window_bounds = array<i64: 1, 1, 2, 128>}, {pipeline_mode = #tpu.pipeline_mode<synchronous>, transform_indices = @transform_2, window_bounds = array<i64: 128, 256>}, {pipeline_mode = #tpu.pipeline_mode<synchronous>, transform_indices = @transform_3, window_bounds = array<i64: 1, 128>}, {pipeline_mode = #tpu.pipeline_mode<synchronous>, transform_indices = @transform_4, window_bounds = array<i64: 1, 128>}, {pipeline_mode = #tpu.pipeline_mode<synchronous>, transform_indices = @transform_5, window_bounds = array<i64: 3, 128, 128>}, {pipeline_mode = #tpu.pipeline_mode<synchronous>, transform_indices = @transform_6, window_bounds = array<i64: 1, 128>}, {pipeline_mode = #tpu.pipeline_mode<synchronous>, transform_indices = @transform_7, window_bounds = array<i64: 128, 128>}, {pipeline_mode = #tpu.pipeline_mode<synchronous>, transform_indices = @transform_8, window_bounds = array<i64: 1, 128>}, {transform_indices = @transform_9, window_bounds = array<i64: 1, 8, 128>}]} {
    %c8_i32 = arith.constant 8 : i32
    %0 = arith.muli %arg1, %c8_i32 : i32
    %c0 = arith.constant 0 : index
    %c0_0 = arith.constant 0 : index
    %c0_1 = arith.constant 0 : index
    %1 = vector.load %arg2[%c0, %c0_0, %c0_1] : memref<1x8x128xbf16, #tpu.memory_space<vmem>>, vector<1x8x128xbf16>
    %2 = vector.shape_cast %1 : vector<1x8x128xbf16> to vector<8x128xbf16>
    %c0_2 = arith.constant 0 : index
    %c0_3 = arith.constant 0 : index
    %3 = vector.load %arg4[%c0_2, %c0_3] : memref<128x256xbf16, #tpu.memory_space<vmem>>, vector<128x256xbf16>
    %cst = arith.constant dense<0.000000e+00> : vector<8x256xf32>
    %4 = tpu.matmul %2, %3, %cst {dimension_numbers = #tpu.dot_dimension_numbers<[1], [0], [0], [1], [0, 0, 1, 1], [], []>} : vector<8x128xbf16>, vector<128x256xbf16>, vector<8x256xf32> -> vector<8x256xf32>
    %5 = vector.extract_strided_slice %4 {offsets = [0, 0], sizes = [8, 128], strides = [1, 1]} : vector<8x256xf32> to vector<8x128xf32>
    %c0_4 = arith.constant 0 : index
    %c0_5 = arith.constant 0 : index
    %6 = vector.load %arg5[%c0_4, %c0_5] : memref<1x128xf32, #tpu.memory_space<vmem>>, vector<1x128xf32>
    %7 = vector.broadcast %6 : vector<1x128xf32> to vector<8x128xf32>
    %8 = arith.addf %5, %7 : vector<8x128xf32>
    %cst_6 = arith.constant 0.000000e+00 : f32
    %9 = vector.broadcast %cst_6 : f32 to vector<8x128xf32>
    %10 = arith.maximumf %8, %9 : vector<8x128xf32>
    %11 = vector.extract_strided_slice %4 {offsets = [0, 128], sizes = [8, 128], strides = [1, 1]} : vector<8x256xf32> to vector<8x128xf32>
    %c0_7 = arith.constant 0 : index
    %c0_8 = arith.constant 0 : index
    %12 = vector.load %arg6[%c0_7, %c0_8] : memref<1x128xf32, #tpu.memory_space<vmem>>, vector<1x128xf32>
    %13 = vector.broadcast %12 : vector<1x128xf32> to vector<8x128xf32>
    %14 = arith.addf %11, %13 : vector<8x128xf32>
    %15 = arith.truncf %14 : vector<8x128xf32> to vector<8x128xbf16>
    %c0_9 = arith.constant 0 : index
    %c0_10 = arith.constant 0 : index
    %c0_11 = arith.constant 0 : index
    %16 = vector.load %arg11[%c0_9, %c0_10, %c0_11] : memref<1x8x128xbf16, #tpu.memory_space<vmem>>, vector<1x8x128xbf16>
    %17 = vector.shape_cast %16 : vector<1x8x128xbf16> to vector<8x128xbf16>
    %18 = vector.shape_cast %15 : vector<8x128xbf16> to vector<1x8x128xbf16>
    tpu.vector_store %arg11[%c0_9, %c0_10, %c0_11], %18 {strides = array<i32>} : memref<1x8x128xbf16, #tpu.memory_space<vmem>>, vector<1x8x128xbf16>,
    %c1_i32 = arith.constant 1 : i32
    %19 = tpu.dynamic_rotate %10 by %c1_i32 dim 0 : vector<8x128xf32>, i32 -> vector<8x128xf32>
    %c7_i32 = arith.constant 7 : i32
    %20 = tpu.dynamic_rotate %10 by %c7_i32 dim 0 : vector<8x128xf32>, i32 -> vector<8x128xf32>
    %21 = tpu.iota {dimensions = array<i32: 0>} : vector<8x1xi32>
    %c0_12 = arith.constant 0 : index
    %c0_13 = arith.constant 0 : index
    %c0_14 = arith.constant 0 : index
    %c0_15 = arith.constant 0 : index
    %22 = vector.load %arg3[%c0_12, %c0_13, %c0_14, %c0_15] : memref<1x1x2x128xbf16, #tpu.memory_space<vmem>>, vector<1x1x2x128xbf16>
    %23 = vector.shape_cast %22 : vector<1x1x2x128xbf16> to vector<2x128xbf16>
    %24 = vector.extract_strided_slice %3 {offsets = [0, 0], sizes = [128, 128], strides = [1, 1]} : vector<128x256xbf16> to vector<128x128xbf16>
    %cst_16 = arith.constant dense<0.000000e+00> : vector<2x128xf32>
    %25 = tpu.matmul %23, %24, %cst_16 {dimension_numbers = #tpu.dot_dimension_numbers<[1], [0], [0], [1], [0, 0, 1, 1], [], []>} : vector<2x128xbf16>, vector<128x128xbf16>, vector<2x128xf32> -> vector<2x128xf32>
    %c0_17 = arith.constant 0 : index
    %c0_18 = arith.constant 0 : index
    %26 = vector.load %arg5[%c0_17, %c0_18] : memref<1x128xf32, #tpu.memory_space<vmem>>, vector<1x128xf32>
    %27 = vector.broadcast %26 : vector<1x128xf32> to vector<2x128xf32>
    %28 = arith.addf %25, %27 : vector<2x128xf32>
    %cst_19 = arith.constant 0.000000e+00 : f32
    %29 = vector.broadcast %cst_19 : f32 to vector<2x128xf32>
    %30 = arith.maximumf %28, %29 : vector<2x128xf32>
    %c0_i32 = arith.constant 0 : i32
    %31 = arith.cmpi sgt, %0, %c0_i32 : i32
    %32 = vector.extract_strided_slice %30 {offsets = [0, 0], sizes = [1, 128], strides = [1, 1]} : vector<2x128xf32> to vector<1x128xf32>
    %cst_20 = arith.constant 0.000000e+00 : f32
    %33 = vector.broadcast %cst_20 : f32 to vector<1x128xf32>
    %34 = arith.select %31, %32, %33 : vector<1x128xf32>
    %c8_i32_21 = arith.constant 8 : i32
    %35 = arith.addi %0, %c8_i32_21 : i32
    %c16_i32 = arith.constant 16 : i32
    %36 = arith.cmpi slt, %35, %c16_i32 : i32
    %37 = vector.extract_strided_slice %30 {offsets = [1, 0], sizes = [1, 128], strides = [1, 1]} : vector<2x128xf32> to vector<1x128xf32>
    %cst_22 = arith.constant 0.000000e+00 : f32
    %38 = vector.broadcast %cst_22 : f32 to vector<1x128xf32>
    %39 = arith.select %36, %37, %38 : vector<1x128xf32>
    %c0_i32_23 = arith.constant 0 : i32
    %40 = vector.broadcast %c0_i32_23 : i32 to vector<8x1xi32>
    %41 = arith.cmpi eq, %21, %40 : vector<8x1xi32>
    %42 = vector.shape_cast %41 : vector<8x1xi1> to vector<8x1xi1>
    %43 = vector.broadcast %42 : vector<8x1xi1> to vector<8x128xi1>
    %44 = vector.shape_cast %34 : vector<1x128xf32> to vector<1x128xf32>
    %45 = vector.broadcast %44 : vector<1x128xf32> to vector<8x128xf32>
    %46 = arith.select %43, %45, %19 : vector<8x128xi1>, vector<8x128xf32>
    %c7_i32_24 = arith.constant 7 : i32
    %47 = vector.broadcast %c7_i32_24 : i32 to vector<8x1xi32>
    %48 = arith.cmpi eq, %21, %47 : vector<8x1xi32>
    %49 = vector.shape_cast %48 : vector<8x1xi1> to vector<8x1xi1>
    %50 = vector.broadcast %49 : vector<8x1xi1> to vector<8x128xi1>
    %51 = vector.shape_cast %39 : vector<1x128xf32> to vector<1x128xf32>
    %52 = vector.broadcast %51 : vector<1x128xf32> to vector<8x128xf32>
    %53 = arith.select %50, %52, %20 : vector<8x128xi1>, vector<8x128xf32>
    %54 = arith.truncf %46 : vector<8x128xf32> to vector<8x128xbf16>
    %c0_25 = arith.constant 0 : index
    %c0_26 = arith.constant 0 : index
    %c0_27 = arith.constant 0 : index
    %55 = vector.load %arg7[%c0_25, %c0_26, %c0_27] : memref<3x128x128xbf16, #tpu.memory_space<vmem>>, vector<1x128x128xbf16>
    %56 = vector.shape_cast %55 : vector<1x128x128xbf16> to vector<128x128xbf16>
    %cst_28 = arith.constant dense<0.000000e+00> : vector<8x128xf32>
    %57 = tpu.matmul %54, %56, %cst_28 {dimension_numbers = #tpu.dot_dimension_numbers<[1], [0], [0], [1], [0, 0, 1, 1], [], []>} : vector<8x128xbf16>, vector<128x128xbf16>, vector<8x128xf32> -> vector<8x128xf32>
    %58 = arith.truncf %10 : vector<8x128xf32> to vector<8x128xbf16>
    %c1 = arith.constant 1 : index
    %c0_29 = arith.constant 0 : index
    %c0_30 = arith.constant 0 : index
    %59 = vector.load %arg7[%c1, %c0_29, %c0_30] : memref<3x128x128xbf16, #tpu.memory_space<vmem>>, vector<1x128x128xbf16>
    %60 = vector.shape_cast %59 : vector<1x128x128xbf16> to vector<128x128xbf16>
    %cst_31 = arith.constant dense<0.000000e+00> : vector<8x128xf32>
    %61 = tpu.matmul %58, %60, %cst_31 {dimension_numbers = #tpu.dot_dimension_numbers<[1], [0], [0], [1], [0, 0, 1, 1], [], []>} : vector<8x128xbf16>, vector<128x128xbf16>, vector<8x128xf32> -> vector<8x128xf32>
    %62 = arith.addf %57, %61 : vector<8x128xf32>
    %63 = arith.truncf %53 : vector<8x128xf32> to vector<8x128xbf16>
    %c2 = arith.constant 2 : index
    %c0_32 = arith.constant 0 : index
    %c0_33 = arith.constant 0 : index
    %64 = vector.load %arg7[%c2, %c0_32, %c0_33] : memref<3x128x128xbf16, #tpu.memory_space<vmem>>, vector<1x128x128xbf16>
    %65 = vector.shape_cast %64 : vector<1x128x128xbf16> to vector<128x128xbf16>
    %cst_34 = arith.constant dense<0.000000e+00> : vector<8x128xf32>
    %66 = tpu.matmul %63, %65, %cst_34 {dimension_numbers = #tpu.dot_dimension_numbers<[1], [0], [0], [1], [0, 0, 1, 1], [], []>} : vector<8x128xbf16>, vector<128x128xbf16>, vector<8x128xf32> -> vector<8x128xf32>
    %67 = arith.addf %62, %66 : vector<8x128xf32>
    %c0_35 = arith.constant 0 : index
    %c0_36 = arith.constant 0 : index
    %68 = vector.load %arg8[%c0_35, %c0_36] : memref<1x128xf32, #tpu.memory_space<vmem>>, vector<1x128xf32>
    %69 = vector.broadcast %68 : vector<1x128xf32> to vector<8x128xf32>
    %70 = arith.addf %67, %69 : vector<8x128xf32>
    %cst_37 = arith.constant 0.000000e+00 : f32
    %71 = vector.broadcast %cst_37 : f32 to vector<8x128xf32>
    %72 = arith.maximumf %70, %71 : vector<8x128xf32>
    %73 = arith.truncf %72 : vector<8x128xf32> to vector<8x128xbf16>
    %c0_38 = arith.constant 0 : index
    %c0_39 = arith.constant 0 : index
    %74 = vector.load %arg9[%c0_38, %c0_39] : memref<128x128xbf16, #tpu.memory_space<vmem>>, vector<128x128xbf16>
    %cst_40 = arith.constant dense<0.000000e+00> : vector<8x128xf32>
    %75 = tpu.matmul %73, %74, %cst_40 {dimension_numbers = #tpu.dot_dimension_numbers<[1], [0], [0], [1], [0, 0, 1, 1], [], []>} : vector<8x128xbf16>, vector<128x128xbf16>, vector<8x128xf32> -> vector<8x128xf32>
    %c0_41 = arith.constant 0 : index
    %c0_42 = arith.constant 0 : index
    %76 = vector.load %arg10[%c0_41, %c0_42] : memref<1x128xf32, #tpu.memory_space<vmem>>, vector<1x128xf32>
    %77 = vector.broadcast %76 : vector<1x128xf32> to vector<8x128xf32>
    %78 = arith.addf %75, %77 : vector<8x128xf32>
    %c0_43 = arith.constant 0 : index
    %c0_44 = arith.constant 0 : index
    %c0_45 = arith.constant 0 : index
    %79 = vector.load %arg11[%c0_43, %c0_44, %c0_45] : memref<1x8x128xbf16, #tpu.memory_space<vmem>>, vector<1x8x128xbf16>
    %80 = vector.shape_cast %79 : vector<1x8x128xbf16> to vector<8x128xbf16>
    %81 = arith.extf %80 : vector<8x128xbf16> to vector<8x128xf32>
    %82 = arith.addf %78, %81 : vector<8x128xf32>
    %cst_46 = arith.constant 0.000000e+00 : f32
    %83 = vector.broadcast %cst_46 : f32 to vector<8x128xf32>
    %84 = arith.maximumf %82, %83 : vector<8x128xf32>
    %85 = arith.truncf %84 : vector<8x128xf32> to vector<8x128xbf16>
    %c0_47 = arith.constant 0 : index
    %c0_48 = arith.constant 0 : index
    %c0_49 = arith.constant 0 : index
    %86 = vector.load %arg11[%c0_47, %c0_48, %c0_49] : memref<1x8x128xbf16, #tpu.memory_space<vmem>>, vector<1x8x128xbf16>
    %87 = vector.shape_cast %86 : vector<1x8x128xbf16> to vector<8x128xbf16>
    %88 = vector.shape_cast %85 : vector<8x128xbf16> to vector<1x8x128xbf16>
    tpu.vector_store %arg11[%c0_47, %c0_48, %c0_49], %88 {strides = array<i32>} : memref<1x8x128xbf16, #tpu.memory_space<vmem>>, vector<1x8x128xbf16>,
    return
  }
  func.func @transform_0(%arg0: i32, %arg1: i32) -> (i32, i32, i32) {
    %c0_i32 = arith.constant 0 : i32
    %c0_i32_0 = arith.constant 0 : i32
    return %arg0, %arg1, %c0_i32 : i32, i32, i32
  }
  func.func @transform_1(%arg0: i32, %arg1: i32) -> (i32, i32, i32, i32) {
    %c0_i32 = arith.constant 0 : i32
    %c0_i32_0 = arith.constant 0 : i32
    %c0_i32_1 = arith.constant 0 : i32
    return %arg0, %arg1, %c0_i32, %c0_i32_0 : i32, i32, i32, i32
  }
  func.func @transform_2(%arg0: i32, %arg1: i32) -> (i32, i32) {
    %c0_i32 = arith.constant 0 : i32
    %c0_i32_0 = arith.constant 0 : i32
    %c0_i32_1 = arith.constant 0 : i32
    return %c0_i32, %c0_i32_0 : i32, i32
  }
  func.func @transform_3(%arg0: i32, %arg1: i32) -> (i32, i32) {
    %c0_i32 = arith.constant 0 : i32
    %c0_i32_0 = arith.constant 0 : i32
    %c0_i32_1 = arith.constant 0 : i32
    return %c0_i32, %c0_i32_0 : i32, i32
  }
  func.func @transform_4(%arg0: i32, %arg1: i32) -> (i32, i32) {
    %c0_i32 = arith.constant 0 : i32
    %c0_i32_0 = arith.constant 0 : i32
    %c0_i32_1 = arith.constant 0 : i32
    return %c0_i32, %c0_i32_0 : i32, i32
  }
  func.func @transform_5(%arg0: i32, %arg1: i32) -> (i32, i32, i32) {
    %c0_i32 = arith.constant 0 : i32
    %c0_i32_0 = arith.constant 0 : i32
    %c0_i32_1 = arith.constant 0 : i32
    %c0_i32_2 = arith.constant 0 : i32
    return %c0_i32, %c0_i32_0, %c0_i32_1 : i32, i32, i32
  }
  func.func @transform_6(%arg0: i32, %arg1: i32) -> (i32, i32) {
    %c0_i32 = arith.constant 0 : i32
    %c0_i32_0 = arith.constant 0 : i32
    %c0_i32_1 = arith.constant 0 : i32
    return %c0_i32, %c0_i32_0 : i32, i32
  }
  func.func @transform_7(%arg0: i32, %arg1: i32) -> (i32, i32) {
    %c0_i32 = arith.constant 0 : i32
    %c0_i32_0 = arith.constant 0 : i32
    %c0_i32_1 = arith.constant 0 : i32
    return %c0_i32, %c0_i32_0 : i32, i32
  }
  func.func @transform_8(%arg0: i32, %arg1: i32) -> (i32, i32) {
    %c0_i32 = arith.constant 0 : i32
    %c0_i32_0 = arith.constant 0 : i32
    %c0_i32_1 = arith.constant 0 : i32
    return %c0_i32, %c0_i32_0 : i32, i32
  }
  func.func @transform_9(%arg0: i32, %arg1: i32) -> (i32, i32, i32) {
    %c0_i32 = arith.constant 0 : i32
    %c0_i32_0 = arith.constant 0 : i32
    return %arg0, %arg1, %c0_i32 : i32, i32, i32
  }
}

</mosaic_0001>

<llo_original>
// kernel: tpu_custom_call.1
$region0: #{tpu_custom_call.1}
  #allocation0 [shape = 'u32[]', space=smem, size = 0x4, offset = 0x4, fixed_abs, tag = 'smem constant byte address 0x4 - core index']
  #allocation1 [shape = 'u32[144,128]{1,0:T(1,128)}', space=vmem, size = 0x12000, scoped, tag = 'internal scratch']
  %s0 = inlined_call_operand.hbm [shape: bf16[2,16,128], index: 0, kind: input, shape index: {}]
  %s1 = inlined_call_operand.hbm [shape: bf16[2,2,2,128], index: 1, kind: input, shape index: {}]
  %s2 = inlined_call_operand.hbm [shape: bf16[128,256], index: 2, kind: input, shape index: {}]
  %s3 = inlined_call_operand.vmem [shape: f32[1,128], index: 3, kind: input, shape index: {}]
  %s4 = inlined_call_operand.vmem [shape: f32[1,128], index: 4, kind: input, shape index: {}]
  %s5 = inlined_call_operand.hbm [shape: bf16[3,128,128], index: 5, kind: input, shape index: {}]
  %s6 = inlined_call_operand.vmem [shape: f32[1,128], index: 6, kind: input, shape index: {}]
  %s7 = inlined_call_operand.hbm [shape: bf16[128,128], index: 7, kind: input, shape index: {}]
  %s8 = inlined_call_operand.vmem [shape: f32[1,128], index: 8, kind: input, shape index: {}]
  %s9 = inlined_call_operand.hbm [shape: bf16[2,16,128], index: 9, kind: output, shape index: {}]
  %s10 = sld [smem:[#allocation0]]
  $region89: #{tpu_custom_call.1} parent=0
    _
  %s12 = ssub.s32 1, %s10
  %s13 = scalar_select 0, %s12, %s10
  $region1: #{tpu_custom_call.1} parent=0
    #allocation2 [shape = 'u8[4096]{0}', space=vmem, size = 0x1000, scoped, tag = 'input window, operand 0']
    #allocation3 [shape = 's32[2]{0}', space=sflag, size = 0x8, scoped, tag = 'scoped memory for tpu_custom_call.1']
    #allocation4 [shape = 's32[2]{0}', space=sflag, size = 0x8, scoped, tag = 'scoped memory for tpu_custom_call.1']
    #allocation5 [shape = 'u8[1024]{0}', space=vmem, size = 0x400, scoped, tag = 'input window, operand 1']
    #allocation6 [shape = 's32[2]{0}', space=sflag, size = 0x8, scoped, tag = 'scoped memory for tpu_custom_call.1']
    #allocation7 [shape = 'u8[65536]{0}', space=vmem, size = 0x10000, scoped, tag = 'input window, operand 2, single buffered']
    #allocation8 [shape = 'u8[98304]{0}', space=vmem, size = 0x18000, scoped, tag = 'input window, operand 5, single buffered']
    #allocation9 [shape = 's32[1]{0}', space=sflag, size = 0x4, scoped, tag = 'scoped memory for tpu_custom_call.1']
    #allocation10 [shape = 'u8[32768]{0}', space=vmem, size = 0x8000, scoped, tag = 'input window, operand 7, single buffered']
    #allocation11 [shape = 'u8[4096]{0}', space=vmem, size = 0x1000, scoped, tag = 'output window, operand 0']
    %14 = vsyncpa [#allocation3], 0
    %s15 = scalar_lea.sflag [#allocation3], 1
    %16 = vsyncpa %s15, 0
    %17 = vsyncpa [#allocation6], 0
    %s18 = scalar_lea.sflag [#allocation6], 1
    %19 = vsyncpa %s18, 0
    %20 = vsyncpa [#allocation9], 0
    %21 = vsyncpa [#allocation4], 0
    %s22 = scalar_lea.sflag [#allocation4], 1
    %23 = vsyncpa %s22, 0
    loop: start=0, step=1, limit=6
    $region2: #{tpu_custom_call.1} parent=1 // loop_pre_header
      _
    $region3: #{tpu_custom_call.1} parent=1 // loop_header
      %s25 = sphi 0, %s29
      %p26 = scmp.ge.s32.totalorder %s25, 6
      %s32 = sphi 0, %s44
      %s33 = sphi 0, %s40
      %s34 = sphi 0, %s32
      %s35 = sphi 0, %s33
      %s36 = sphi 0, %s34
      %s37 = sphi 0, %s35
      %s49 = sphi 0, %s51
      %s52 = sphi 0, %s49
      %s53 = sphi 0, %s52
      %s69 = sphi 0, %s53
      %s77 = sphi 0, %s79
      %s80 = sphi 0, %s77
      %s81 = sphi 0, %s80
      %s97 = sphi 0, %s81
      %s101 = sphi 0, %s101
      %s103 = sphi 0, %s101
      %s104 = sphi 0, %s103
      %s118 = sphi 0, %s104
      %s122 = sphi 0, %s122
      %s124 = sphi 0, %s122
      %s125 = sphi 0, %s124
      %s139 = sphi 0, %s125
      %s143 = sphi 0, %s143
      %s145 = sphi 0, %s143
      %s146 = sphi 0, %s145
      %s160 = sphi 0, %s146
      %s164 = sphi 0, %s164
      %s166 = sphi 0, %s164
      %s167 = sphi 0, %s166
      %s181 = sphi 0, %s167
      %s185 = sphi 0, %s185
      %s187 = sphi 0, %s185
      %s188 = sphi 0, %s187
      %s202 = sphi 0, %s188
      %s206 = sphi 0, %s206
      %s208 = sphi 0, %s206
      %s209 = sphi 0, %s208
      %s223 = sphi 0, %s209
      %s227 = sphi 0, %s227
      %s229 = sphi 0, %s227
      %s230 = sphi 0, %s229
      %s244 = sphi 0, %s230
      %s252 = sphi 0, %s254
      %s255 = sphi 0, %s252
      %s256 = sphi 0, %s255
      %s272 = sphi 0, %s256
    $region4: #{tpu_custom_call.1} parent=1 // loop_header_branch
      %28 = sbr.rel (%p26) target = $region8
    $region5: #{tpu_custom_call.1} parent=1 // loop_body
      %s30 = ssub.s32 %s25, 1
      %s31 = ssub.s32 %s25, 2
      %s38 = sadd.s32 1, %s33
      %p39 = scmp.ge.s32.totalorder %s38, 2
      %s40 = scalar_select %p39, 0, %s38
      %s41 = sadd.s32 1, %s32
      %s42 = scalar_select %p39, %s41, %s32
      %p43 = scmp.ge.s32.totalorder %s42, 2
      %s44 = scalar_select %p43, 0, %s42
      %s45 = ssub.s32 %s32, %s44
      %s46 = ssub.s32 %s33, %s40
      %s47 = sor.u32 %s45, %s46
      %p48 = scmp.eq.s32.totalorder %s47, 0
      %s50 = sadd.s32 %s49, 1
      %s51 = scalar_select %p48, %s49, %s50
      %p54 = pneg %p48
      %p55 = scmp.eq.s32.totalorder %s25, 3
      %p56 = por %p54, %p55
      %p57 = scmp.ne.s32.totalorder %s49, %s52
      %p58 = scmp.eq.s32.totalorder %s25, 0
      %p59 = por %p57, %p58
      %p60 = scmp.ne.s32.totalorder %s49, %s52
      %p61 = scmp.eq.s32.totalorder %s30, 3
      %p62 = por %p60, %p61
      %p63 = scmp.ne.s32.totalorder %s52, %s53
      %p64 = scmp.eq.s32.totalorder %s30, 0
      %p65 = por %p63, %p64
      %p66 = scmp.ne.s32.totalorder %s52, %s53
      %p67 = scmp.eq.s32.totalorder %s31, 3
      %p68 = por %p66, %p67
      %p70 = scmp.ne.s32.totalorder %s53, %s69
      %p71 = scmp.eq.s32.totalorder %s31, 0
      %p72 = por %p70, %p71
      %s73 = ssub.s32 %s32, %s44
      %s74 = ssub.s32 %s33, %s40
      %s75 = sor.u32 %s73, %s74
      %p76 = scmp.eq.s32.totalorder %s75, 0
      %s78 = sadd.s32 %s77, 1
      %s79 = scalar_select %p76, %s77, %s78
      %p82 = pneg %p76
      %p83 = scmp.eq.s32.totalorder %s25, 3
      %p84 = por %p82, %p83
      %p85 = scmp.ne.s32.totalorder %s77, %s80
      %p86 = scmp.eq.s32.totalorder %s25, 0
      %p87 = por %p85, %p86
      %p88 = scmp.ne.s32.totalorder %s77, %s80
      %p89 = scmp.eq.s32.totalorder %s30, 3
      %p90 = por %p88, %p89
      %p91 = scmp.ne.s32.totalorder %s80, %s81
      %p92 = scmp.eq.s32.totalorder %s30, 0
      %p93 = por %p91, %p92
      %p94 = scmp.ne.s32.totalorder %s80, %s81
      %p95 = scmp.eq.s32.totalorder %s31, 3
      %p96 = por %p94, %p95
      %p98 = scmp.ne.s32.totalorder %s81, %s97
      %p99 = scmp.eq.s32.totalorder %s31, 0
      %p100 = por %p98, %p99
      %s102 = sadd.s32 %s101, 1
      %p105 = scmp.eq.s32.totalorder %s25, 3
      %p106 = scmp.ne.s32.totalorder %s101, %s103
      %p107 = scmp.eq.s32.totalorder %s25, 0
      %p108 = por %p106, %p107
      %p109 = scmp.ne.s32.totalorder %s101, %s103
      %p110 = scmp.eq.s32.totalorder %s30, 3
      %p111 = por %p109, %p110
      %p112 = scmp.ne.s32.totalorder %s103, %s104
      %p113 = scmp.eq.s32.totalorder %s30, 0
      %p114 = por %p112, %p113
      %p115 = scmp.ne.s32.totalorder %s103, %s104
      %p116 = scmp.eq.s32.totalorder %s31, 3
      %p117 = por %p115, %p116
      %p119 = scmp.ne.s32.totalorder %s104, %s118
      %p120 = scmp.eq.s32.totalorder %s31, 0
      %p121 = por %p119, %p120
      %s123 = sadd.s32 %s122, 1
      %p126 = scmp.eq.s32.totalorder %s25, 3
      %p127 = scmp.ne.s32.totalorder %s122, %s124
      %p128 = scmp.eq.s32.totalorder %s25, 0
      %p129 = por %p127, %p128
      %p130 = scmp.ne.s32.totalorder %s122, %s124
      %p131 = scmp.eq.s32.totalorder %s30, 3
      %p132 = por %p130, %p131
      %p133 = scmp.ne.s32.totalorder %s124, %s125
      %p134 = scmp.eq.s32.totalorder %s30, 0
      %p135 = por %p133, %p134
      %p136 = scmp.ne.s32.totalorder %s124, %s125
      %p137 = scmp.eq.s32.totalorder %s31, 3
      %p138 = por %p136, %p137
      %p140 = scmp.ne.s32.totalorder %s125, %s139
      %p141 = scmp.eq.s32.totalorder %s31, 0
      %p142 = por %p140, %p141
      %s144 = sadd.s32 %s143, 1
      %p147 = scmp.eq.s32.totalorder %s25, 3
      %p148 = scmp.ne.s32.totalorder %s143, %s145
      %p149 = scmp.eq.s32.totalorder %s25, 0
      %p150 = por %p148, %p149
      %p151 = scmp.ne.s32.totalorder %s143, %s145
      %p152 = scmp.eq.s32.totalorder %s30, 3
      %p153 = por %p151, %p152
      %p154 = scmp.ne.s32.totalorder %s145, %s146
      %p155 = scmp.eq.s32.totalorder %s30, 0
      %p156 = por %p154, %p155
      %p157 = scmp.ne.s32.totalorder %s145, %s146
      %p158 = scmp.eq.s32.totalorder %s31, 3
      %p159 = por %p157, %p158
      %p161 = scmp.ne.s32.totalorder %s146, %s160
      %p162 = scmp.eq.s32.totalorder %s31, 0
      %p163 = por %p161, %p162
      %s165 = sadd.s32 %s164, 1
      %p168 = scmp.eq.s32.totalorder %s25, 3
      %p169 = scmp.ne.s32.totalorder %s164, %s166
      %p170 = scmp.eq.s32.totalorder %s25, 0
      %p171 = por %p169, %p170
      %p172 = scmp.ne.s32.totalorder %s164, %s166
      %p173 = scmp.eq.s32.totalorder %s30, 3
      %p174 = por %p172, %p173
      %p175 = scmp.ne.s32.totalorder %s166, %s167
      %p176 = scmp.eq.s32.totalorder %s30, 0
      %p177 = por %p175, %p176
      %p178 = scmp.ne.s32.totalorder %s166, %s167
      %p179 = scmp.eq.s32.totalorder %s31, 3
      %p180 = por %p178, %p179
      %p182 = scmp.ne.s32.totalorder %s167, %s181
      %p183 = scmp.eq.s32.totalorder %s31, 0
      %p184 = por %p182, %p183
      %s186 = sadd.s32 %s185, 1
      %p189 = scmp.eq.s32.totalorder %s25, 3
      %p190 = scmp.ne.s32.totalorder %s185, %s187
      %p191 = scmp.eq.s32.totalorder %s25, 0
      %p192 = por %p190, %p191
      %p193 = scmp.ne.s32.totalorder %s185, %s187
      %p194 = scmp.eq.s32.totalorder %s30, 3
      %p195 = por %p193, %p194
      %p196 = scmp.ne.s32.totalorder %s187, %s188
      %p197 = scmp.eq.s32.totalorder %s30, 0
      %p198 = por %p196, %p197
      %p199 = scmp.ne.s32.totalorder %s187, %s188
      %p200 = scmp.eq.s32.totalorder %s31, 3
      %p201 = por %p199, %p200
      %p203 = scmp.ne.s32.totalorder %s188, %s202
      %p204 = scmp.eq.s32.totalorder %s31, 0
      %p205 = por %p203, %p204
      %s207 = sadd.s32 %s206, 1
      %p210 = scmp.eq.s32.totalorder %s25, 3
      %p211 = scmp.ne.s32.totalorder %s206, %s208
      %p212 = scmp.eq.s32.totalorder %s25, 0
      %p213 = por %p211, %p212
      %p214 = scmp.ne.s32.totalorder %s206, %s208
      %p215 = scmp.eq.s32.totalorder %s30, 3
      %p216 = por %p214, %p215
      %p217 = scmp.ne.s32.totalorder %s208, %s209
      %p218 = scmp.eq.s32.totalorder %s30, 0
      %p219 = por %p217, %p218
      %p220 = scmp.ne.s32.totalorder %s208, %s209
      %p221 = scmp.eq.s32.totalorder %s31, 3
      %p222 = por %p220, %p221
      %p224 = scmp.ne.s32.totalorder %s209, %s223
      %p225 = scmp.eq.s32.totalorder %s31, 0
      %p226 = por %p224, %p225
      %s228 = sadd.s32 %s227, 1
      %p231 = scmp.eq.s32.totalorder %s25, 3
      %p232 = scmp.ne.s32.totalorder %s227, %s229
      %p233 = scmp.eq.s32.totalorder %s25, 0
      %p234 = por %p232, %p233
      %p235 = scmp.ne.s32.totalorder %s227, %s229
      %p236 = scmp.eq.s32.totalorder %s30, 3
      %p237 = por %p235, %p236
      %p238 = scmp.ne.s32.totalorder %s229, %s230
      %p239 = scmp.eq.s32.totalorder %s30, 0
      %p240 = por %p238, %p239
      %p241 = scmp.ne.s32.totalorder %s229, %s230
      %p242 = scmp.eq.s32.totalorder %s31, 3
      %p243 = por %p241, %p242
      %p245 = scmp.ne.s32.totalorder %s230, %s244
      %p246 = scmp.eq.s32.totalorder %s31, 0
      %p247 = por %p245, %p246
      %s248 = ssub.s32 %s32, %s44
      %s249 = ssub.s32 %s33, %s40
      %s250 = sor.u32 %s248, %s249
      %p251 = scmp.eq.s32.totalorder %s250, 0
      %s253 = sadd.s32 %s252, 1
      %s254 = scalar_select %p251, %s252, %s253
      %p257 = pneg %p251
      %p258 = scmp.eq.s32.totalorder %s25, 3
      %p259 = por %p257, %p258
      %p260 = scmp.ne.s32.totalorder %s252, %s255
      %p261 = scmp.eq.s32.totalorder %s25, 0
      %p262 = por %p260, %p261
      %p263 = scmp.ne.s32.totalorder %s252, %s255
      %p264 = scmp.eq.s32.totalorder %s30, 3
      %p265 = por %p263, %p264
      %p266 = scmp.ne.s32.totalorder %s255, %s256
      %p267 = scmp.eq.s32.totalorder %s30, 0
      %p268 = por %p266, %p267
      %p269 = scmp.ne.s32.totalorder %s255, %s256
      %p270 = scmp.eq.s32.totalorder %s31, 3
      %p271 = por %p269, %p270
      %p273 = scmp.ne.s32.totalorder %s256, %s272
      %p274 = scmp.eq.s32.totalorder %s31, 0
      %p275 = por %p273, %p274
      %p276 = scmp.le.s32.totalorder 1, %s25
      %p277 = scmp.lt.s32.totalorder %s25, 5
      %p278 = pnand %p276, %p277
      %p279 = pneg %p278
      // Predicated region
      $region9: #{tpu_custom_call.1} parent=5 // pred_check
        _
      $region10: #{tpu_custom_call.1} parent=5 // pred_check_branch
        %281 = sbr.rel (%p278) target = $region12
      $region11: #{tpu_custom_call.1} parent=5 // pred_region
        %s282 = ssub.s32 %s25, 1
        // Predicated region
        $region13: #{tpu_custom_call.1} parent=11 // pred_check
          %p283 = pneg %p114
        $region14: #{tpu_custom_call.1} parent=11 // pred_check_branch
          %285 = sbr.rel (%p283) target = $region16
        $region15: #{tpu_custom_call.1} parent=11 // pred_region
          %s287 = ssub.s32 2048, 2048
          %288 = vsyncadd [#allocation6], %s287
          %s289 = sshll.u32 [#allocation7], 4
          %s290 = int_to_ptr.vmem [resolvable:$true] %s289
          %295 = dma.hbm_to_vmem [thread:$0]  %s2, 2048, %s290, [#allocation6], 128, 128, 8
        $region16: #{tpu_custom_call.1} parent=11 // pred_fallthru
          _
        // Predicated region
        $region17: #{tpu_custom_call.1} parent=11 // pred_check
          %p296 = pneg %p135
        $region18: #{tpu_custom_call.1} parent=11 // pred_check_branch
          %298 = sbr.rel (%p296) target = $region20
        $region19: #{tpu_custom_call.1} parent=11 // pred_region
          _
        $region20: #{tpu_custom_call.1} parent=11 // pred_fallthru
          _
        // Predicated region
        $region21: #{tpu_custom_call.1} parent=11 // pred_check
          %p299 = pneg %p156
        $region22: #{tpu_custom_call.1} parent=11 // pred_check_branch
          %301 = sbr.rel (%p299) target = $region24
        $region23: #{tpu_custom_call.1} parent=11 // pred_region
          _
        $region24: #{tpu_custom_call.1} parent=11 // pred_fallthru
          _
        // Predicated region
        $region25: #{tpu_custom_call.1} parent=11 // pred_check
          %p302 = pneg %p177
        $region26: #{tpu_custom_call.1} parent=11 // pred_check_branch
          %304 = sbr.rel (%p302) target = $region28
        $region27: #{tpu_custom_call.1} parent=11 // pred_region
          %s306 = ssub.s32 3072, 3072
          %307 = vsyncadd [#allocation9], %s306
          %s308 = sshll.u32 [#allocation8], 4
          %s309 = int_to_ptr.vmem [resolvable:$true] %s308
          %314 = dma.hbm_to_vmem [thread:$0]  %s5, 3072, %s309, [#allocation9], 64, 64, 4
        $region28: #{tpu_custom_call.1} parent=11 // pred_fallthru
          _
        // Predicated region
        $region29: #{tpu_custom_call.1} parent=11 // pred_check
          %p315 = pneg %p198
        $region30: #{tpu_custom_call.1} parent=11 // pred_check_branch
          %317 = sbr.rel (%p315) target = $region32
        $region31: #{tpu_custom_call.1} parent=11 // pred_region
          _
        $region32: #{tpu_custom_call.1} parent=11 // pred_fallthru
          _
        // Predicated region
        $region33: #{tpu_custom_call.1} parent=11 // pred_check
          %p318 = pneg %p219
        $region34: #{tpu_custom_call.1} parent=11 // pred_check_branch
          %320 = sbr.rel (%p318) target = $region36
        $region35: #{tpu_custom_call.1} parent=11 // pred_region
          %s322 = ssub.s32 1024, 1024
          %323 = vsyncadd [#allocation9], %s322
          %s324 = sshll.u32 [#allocation10], 4
          %s325 = int_to_ptr.vmem [resolvable:$true] %s324
          %330 = dma.hbm_to_vmem [thread:$0]  %s7, 1024, %s325, [#allocation9], 64, 64, 4
        $region36: #{tpu_custom_call.1} parent=11 // pred_fallthru
          _
        // Predicated region
        $region37: #{tpu_custom_call.1} parent=11 // pred_check
          %p331 = pneg %p240
        $region38: #{tpu_custom_call.1} parent=11 // pred_check_branch
          %333 = sbr.rel (%p331) target = $region40
        $region39: #{tpu_custom_call.1} parent=11 // pred_region
          _
        $region40: #{tpu_custom_call.1} parent=11 // pred_fallthru
          _
      $region12: #{tpu_custom_call.1} parent=5 // pred_fallthru
        _
      %p334 = scmp.lt.s32.totalorder %s25, 4
      // Predicated region
      $region41: #{tpu_custom_call.1} parent=5 // pred_check
        %p335 = pneg %p334
      $region42: #{tpu_custom_call.1} parent=5 // pred_check_branch
        %337 = sbr.rel (%p335) target = $region44
      $region43: #{tpu_custom_call.1} parent=5 // pred_region
        // Predicated region
        $region45: #{tpu_custom_call.1} parent=43 // pred_check
          %p338 = pneg %p59
        $region46: #{tpu_custom_call.1} parent=43 // pred_check_branch
          %340 = sbr.rel (%p338) target = $region48
        $region47: #{tpu_custom_call.1} parent=43 // pred_region
          %s341 = sand.u32 %s49, 1
          %s342 = scalar_lea.sflag [#allocation3], %s341
          %s343 = sand.u32 %s49, 1
          %s344 = smul.addr %s343, 4
          %s345 = scalar_lea.vmem [#allocation2], %s344
          %s347 = ssub.s32 64, 64
          %348 = vsyncadd %s342, %s347
          %s349 = smul.addr %s32, 2
          %s350 = sadd.s32 %s33, %s349
          %s351 = smul.addr %s350, 64
          %s352 = scalar_lea.hbm %s0, %s351
          %s354 = sshll.u32 %s345, 4
          %s355 = int_to_ptr.vmem [resolvable:$true] %s354
          %357 = dma.hbm_to_vmem [thread:$0]  %s352, 64, %s355, %s342
        $region48: #{tpu_custom_call.1} parent=43 // pred_fallthru
          _
        // Predicated region
        $region49: #{tpu_custom_call.1} parent=43 // pred_check
          %p358 = pneg %p87
        $region50: #{tpu_custom_call.1} parent=43 // pred_check_branch
          %360 = sbr.rel (%p358) target = $region52
        $region51: #{tpu_custom_call.1} parent=43 // pred_region
          %s361 = sand.u32 %s25, 1
          %s362 = scalar_lea.sflag [#allocation6], %s361
          %s363 = sand.u32 %s77, 1
          %s364 = scalar_lea.vmem [#allocation5], %s363
          %s366 = ssub.s32 16, 16
          %367 = vsyncadd %s362, %s366
          %s368 = smul.addr %s32, 2
          %s369 = sadd.s32 %s33, %s368
          %s370 = smul.addr %s369, 16
          %s371 = scalar_lea.hbm %s1, %s370
          %s373 = sshll.u32 %s364, 4
          %s374 = int_to_ptr.vmem [resolvable:$true] %s373
          %376 = dma.hbm_to_vmem [thread:$0]  %s371, 16, %s374, %s362
        $region52: #{tpu_custom_call.1} parent=43 // pred_fallthru
          _
      $region44: #{tpu_custom_call.1} parent=5 // pred_fallthru
        _
      %p377 = scmp.le.s32.totalorder 1, %s25
      %p378 = scmp.lt.s32.totalorder %s25, 5
      %p379 = pnand %p377, %p378
      %p380 = pneg %p379
      // Predicated region
      $region53: #{tpu_custom_call.1} parent=5 // pred_check
        _
      $region54: #{tpu_custom_call.1} parent=5 // pred_check_branch
        %382 = sbr.rel (%p379) target = $region56
      $region55: #{tpu_custom_call.1} parent=5 // pred_region
        %s383 = ssub.s32 %s25, 1
        %s384 = sand.u32 %s52, 1
        %s385 = scalar_lea.sflag [#allocation3], %s384
        %s386 = sand.u32 %s52, 1
        %s387 = smul.addr %s386, 4
        %s388 = scalar_lea.vmem [#allocation2], %s387
        // Predicated region
        $region57: #{tpu_custom_call.1} parent=55 // pred_check
          %p389 = pneg %p65
        $region58: #{tpu_custom_call.1} parent=55 // pred_check_branch
          %391 = sbr.rel (%p389) target = $region60
        $region59: #{tpu_custom_call.1} parent=55 // pred_region
          %392 = dma.done %s385, 64
        $region60: #{tpu_custom_call.1} parent=55 // pred_fallthru
          _
        %s393 = sand.u32 %s30, 1
        %s394 = scalar_lea.sflag [#allocation6], %s393
        %s395 = sand.u32 %s80, 1
        %s396 = scalar_lea.vmem [#allocation5], %s395
        // Predicated region
        $region61: #{tpu_custom_call.1} parent=55 // pred_check
          %p397 = pneg %p93
        $region62: #{tpu_custom_call.1} parent=55 // pred_check_branch
          %399 = sbr.rel (%p397) target = $region64
        $region63: #{tpu_custom_call.1} parent=55 // pred_region
          %400 = dma.done %s394, 16
        $region64: #{tpu_custom_call.1} parent=55 // pred_fallthru
          _
        // Predicated region
        $region65: #{tpu_custom_call.1} parent=55 // pred_check
          %p401 = pneg %p114
        $region66: #{tpu_custom_call.1} parent=55 // pred_check_branch
          %403 = sbr.rel (%p401) target = $region68
        $region67: #{tpu_custom_call.1} parent=55 // pred_region
          %404 = dma.done [#allocation6], 2048
        $region68: #{tpu_custom_call.1} parent=55 // pred_fallthru
          _
        // Predicated region
        $region69: #{tpu_custom_call.1} parent=55 // pred_check
          %p405 = pneg %p177
        $region70: #{tpu_custom_call.1} parent=55 // pred_check_branch
          %407 = sbr.rel (%p405) target = $region72
        $region71: #{tpu_custom_call.1} parent=55 // pred_region
          %408 = dma.done [#allocation9], 3072
        $region72: #{tpu_custom_call.1} parent=55 // pred_fallthru
          _
        // Predicated region
        $region73: #{tpu_custom_call.1} parent=55 // pred_check
          %p409 = pneg %p219
        $region74: #{tpu_custom_call.1} parent=55 // pred_check_branch
          %411 = sbr.rel (%p409) target = $region76
        $region75: #{tpu_custom_call.1} parent=55 // pred_region
          %412 = dma.done [#allocation9], 1024
        $region76: #{tpu_custom_call.1} parent=55 // pred_fallthru
          _
        %s413 = sand.u32 %s52, 1
        %s414 = scalar_lea.sflag [#allocation3], %s413
        %s415 = sand.u32 %s52, 1
        %s416 = smul.addr %s415, 4
        %s417 = scalar_lea.vmem [#allocation2], %s416
        %p418 = pneg %p65
        %p419 = pneg %p62
        %s420 = sand.u32 %s30, 1
        %s421 = scalar_lea.sflag [#allocation6], %s420
        %s422 = sand.u32 %s80, 1
        %s423 = scalar_lea.vmem [#allocation5], %s422
        %p424 = pneg %p93
        %p425 = pneg %p90
        %p426 = pneg %p114
        %p427 = pneg %p111
        %p428 = pneg %p135
        %p429 = pneg %p132
        %p430 = pneg %p156
        %p431 = pneg %p153
        %p432 = pneg %p177
        %p433 = pneg %p174
        %p434 = pneg %p198
        %p435 = pneg %p195
        %p436 = pneg %p219
        %p437 = pneg %p216
        %p438 = pneg %p240
        %p439 = pneg %p237
        %p440 = pneg %p268
        %p441 = pneg %p265
        %s442 = sand.u32 %s255, 1
        %s443 = scalar_lea.sflag [#allocation4], %s442
        %s444 = sand.u32 %s255, 1
        %s445 = smul.addr %s444, 4
        %s446 = scalar_lea.vmem [#allocation11], %s445
        %s448 = smul.u32 %s35, 8
        %v449 = vld [vmem:[%s388] sm:$0xf]
        %v450 = vld [vmem:[#allocation7] sm:$0xff]
        %v451 = vld [vmem:[#allocation7 + $0x8] sm:$0xff]
        %v452 = vld [vmem:[#allocation7 + $0x10] sm:$0xff]
        %v453 = vld [vmem:[#allocation7 + $0x18] sm:$0xff]
        %v454 = vld [vmem:[#allocation7 + $0x20] sm:$0xff]
        %v455 = vld [vmem:[#allocation7 + $0x28] sm:$0xff]
        %v456 = vld [vmem:[#allocation7 + $0x30] sm:$0xff]
        %v457 = vld [vmem:[#allocation7 + $0x38] sm:$0xff]
        %v458 = vld [vmem:[#allocation7 + $0x40] sm:$0xff]
        %v459 = vld [vmem:[#allocation7 + $0x48] sm:$0xff]
        %v460 = vld [vmem:[#allocation7 + $0x50] sm:$0xff]
        %v461 = vld [vmem:[#allocation7 + $0x58] sm:$0xff]
        %v462 = vld [vmem:[#allocation7 + $0x60] sm:$0xff]
        %v463 = vld [vmem:[#allocation7 + $0x68] sm:$0xff]
        %v464 = vld [vmem:[#allocation7 + $0x70] sm:$0xff]
        %v465 = vld [vmem:[#allocation7 + $0x78] sm:$0xff]
        %v482 = vunpack.c.l.b16 %v450
        %v483 = vunpack.c.h.b16 %v450
        %v484 = vunpack.c.l.b16 %v451
        %v485 = vunpack.c.h.b16 %v451
        %v486 = vunpack.c.l.b16 %v452
        %v487 = vunpack.c.h.b16 %v452
        %v488 = vunpack.c.l.b16 %v453
        %v489 = vunpack.c.h.b16 %v453
        %v490 = vunpack.c.l.b16 %v454
        %v491 = vunpack.c.h.b16 %v454
        %v492 = vunpack.c.l.b16 %v455
        %v493 = vunpack.c.h.b16 %v455
        %v494 = vunpack.c.l.b16 %v456
        %v495 = vunpack.c.h.b16 %v456
        %v496 = vunpack.c.l.b16 %v457
        %v497 = vunpack.c.h.b16 %v457
        %v498 = vunpack.c.l.b16 %v458
        %v499 = vunpack.c.h.b16 %v458
        %v500 = vunpack.c.l.b16 %v459
        %v501 = vunpack.c.h.b16 %v459
        %v502 = vunpack.c.l.b16 %v460
        %v503 = vunpack.c.h.b16 %v460
        %v504 = vunpack.c.l.b16 %v461
        %v505 = vunpack.c.h.b16 %v461
        %v506 = vunpack.c.l.b16 %v462
        %v507 = vunpack.c.h.b16 %v462
        %v508 = vunpack.c.l.b16 %v463
        %v509 = vunpack.c.h.b16 %v463
        %v510 = vunpack.c.l.b16 %v464
        %v511 = vunpack.c.h.b16 %v464
        %v512 = vunpack.c.l.b16 %v465
        %v513 = vunpack.c.h.b16 %v465
        %v514 = vpack.c.b16 %v484, %v482
        %v515 = vpack.c.b16 %v485, %v483
        %v516 = vpack.c.b16 %v488, %v486
        %v517 = vpack.c.b16 %v489, %v487
        %v518 = vpack.c.b16 %v492, %v490
        %v519 = vpack.c.b16 %v493, %v491
        %v520 = vpack.c.b16 %v496, %v494
        %v521 = vpack.c.b16 %v497, %v495
        %v522 = vpack.c.b16 %v500, %v498
        %v523 = vpack.c.b16 %v501, %v499
        %v524 = vpack.c.b16 %v504, %v502
        %v525 = vpack.c.b16 %v505, %v503
        %v526 = vpack.c.b16 %v508, %v506
        %v527 = vpack.c.b16 %v509, %v507
        %v528 = vpack.c.b16 %v512, %v510
        %v529 = vpack.c.b16 %v513, %v511
        %546 = vmatprep.subr.bf16.mxu0 %v529
        %547 = vmatpush1.bf16.msra.mxu0 %v528
        %548 = vmatprep.subr.bf16.mxu0 %v527
        %549 = vmatpush1.bf16.msra.mxu0 %v526
        %550 = vmatprep.subr.bf16.mxu0 %v525
        %551 = vmatpush1.bf16.msra.mxu0 %v524
        %552 = vmatprep.subr.bf16.mxu0 %v523
        %553 = vmatpush1.bf16.msra.mxu0 %v522
        %554 = vmatprep.subr.bf16.mxu0 %v521
        %555 = vmatpush1.bf16.msra.mxu0 %v520
        %556 = vmatprep.subr.bf16.mxu0 %v519
        %557 = vmatpush1.bf16.msra.mxu0 %v518
        %558 = vmatprep.subr.bf16.mxu0 %v517
        %559 = vmatpush1.bf16.msra.mxu0 %v516
        %560 = vmatprep.subr.bf16.mxu0 %v515
        %561 = vmatpush1.bf16.msra.mxu0 %v514
        %562 = vmatprep.subr.bf16.mxu0 0
        %563 = vmatpush2.bf16.msra.mxu0 0
        %564 = vmatprep.subr.bf16.mxu0 0
        %565 = vmatpush2.bf16.msra.mxu0 0
        %566 = vmatprep.subr.bf16.mxu0 0
        %567 = vmatpush2.bf16.msra.mxu0 0
        %568 = vmatprep.subr.bf16.mxu0 0
        %569 = vmatpush2.bf16.msra.mxu0 0
        %570 = vmatprep.subr.bf16.mxu0 0
        %571 = vmatpush2.bf16.msra.mxu0 0
        %572 = vmatprep.subr.bf16.mxu0 0
        %573 = vmatpush2.bf16.msra.mxu0 0
        %574 = vmatprep.subr.bf16.mxu0 0
        %575 = vmatpush2.bf16.msra.mxu0 0
        %576 = vmatprep.subr.bf16.mxu0 0
        %577 = vmatpush2.bf16.msra.mxu0 0
        %578 = vmatprep.mubr.bf16.mxu0 0
        %579 = vmatmul.mubr.bf16.gmra.mxu0 %v449
        %v580 = vpop.f32.mrf.mxu0
        %v581 = vadd.f32 0.0, %v580
        %v582 = vpop.f32.mrf.mxu0
        %v583 = vadd.f32 0.0, %v582
        %v584 = vpop.f32.mrf.mxu0
        %v585 = vpop.f32.mrf.mxu0
        %586 = vdwg.mxu0
        %v587 = vld [vmem:[%s3] sm:$0x1]
        %v589 = vlaneseq
        %v590 = vshrl.u32 %v589, 7
        %v591 = vsub.s32 0, %v590
        %v592 = vrot.slane %v587, %v591
        %v594 = vadd.f32 %v581, %v592
        %v595 = vmax.f32 %v594, 0.0
        %v596 = vld [vmem:[%s4] sm:$0x1]
        %v598 = vlaneseq
        %v599 = vshrl.u32 %v598, 7
        %v600 = vsub.s32 0, %v599
        %v601 = vrot.slane %v596, %v600
        %v603 = vadd.f32 %v583, %v601
        %v604 = vpack.c.bf16 %v603, %v603
        %605 = vst [vmem:[%s446] sm:$0xf] %v604
        %v606 = vrot.slane %v595, 7
        %v607 = vrot.slane %v595, 1
        %v608 = vlaneseq
        %v609 = vshrl.u32 %v608, 7
        %v610 = vld [vmem:[%s396] sm:$0x1]
        %v611 = vld [vmem:[%s3] sm:$0x1]
        %v613 = vlaneseq
        %v614 = vshrl.u32 %v613, 7
        %v615 = vsub.s32 0, %v614
        %v616 = vrot.slane %v611, %v615
        %618 = vmatprep.subr.bf16.mxu0 0
        %619 = vmatpush1.bf16.msra.mxu0 %v528
        %620 = vmatprep.subr.bf16.mxu0 0
        %621 = vmatpush1.bf16.msra.mxu0 %v526
        %622 = vmatprep.subr.bf16.mxu0 0
        %623 = vmatpush1.bf16.msra.mxu0 %v524
        %624 = vmatprep.subr.bf16.mxu0 0
        %625 = vmatpush1.bf16.msra.mxu0 %v522
        %626 = vmatprep.subr.bf16.mxu0 0
        %627 = vmatpush1.bf16.msra.mxu0 %v520
        %628 = vmatprep.subr.bf16.mxu0 0
        %629 = vmatpush1.bf16.msra.mxu0 %v518
        %630 = vmatprep.subr.bf16.mxu0 0
        %631 = vmatpush1.bf16.msra.mxu0 %v516
        %632 = vmatprep.subr.bf16.mxu0 0
        %633 = vmatpush1.bf16.msra.mxu0 %v514
        %634 = vmatprep.subr.bf16.mxu0 0
        %635 = vmatpush2.bf16.msra.mxu0 0
        %636 = vmatprep.subr.bf16.mxu0 0
        %637 = vmatpush2.bf16.msra.mxu0 0
        %638 = vmatprep.subr.bf16.mxu0 0
        %639 = vmatpush2.bf16.msra.mxu0 0
        %640 = vmatprep.subr.bf16.mxu0 0
        %641 = vmatpush2.bf16.msra.mxu0 0
        %642 = vmatprep.subr.bf16.mxu0 0
        %643 = vmatpush2.bf16.msra.mxu0 0
        %644 = vmatprep.subr.bf16.mxu0 0
        %645 = vmatpush2.bf16.msra.mxu0 0
        %646 = vmatprep.subr.bf16.mxu0 0
        %647 = vmatpush2.bf16.msra.mxu0 0
        %648 = vmatprep.subr.bf16.mxu0 0
        %649 = vmatpush2.bf16.msra.mxu0 0
        %650 = vmatprep.mubr.bf16.mxu0 0
        %651 = vmatmul.mubr.bf16.gmra.mxu0 %v610
        %v652 = vpop.f32.mrf.mxu0
        %v653 = vadd.f32 %v616, %v652
        %v654 = vpop.f32.mrf.mxu0
        %v655 = vpop.f32.mrf.mxu0
        %v656 = vpop.f32.mrf.mxu0
        %657 = vdwg.mxu0
        %v658 = vmax.f32 %v653, 0.0
        %p659 = scmp.gt.s32.totalorder %s448, 0
        %s660 = scalar_select %p659, 1, 0
        %v661 = vstv %s660
        %vm662 = vcmp.eq.s32.totalorder %v661, 1
        %v663 = vsel %vm662, %v658, 0.0
        %s664 = sadd.s32 %s448, 8
        %p665 = scmp.lt.s32.totalorder %s664, 16
        %s666 = scalar_select %p665, 1, 0
        %v667 = vstv %s666
        %vm668 = vcmp.eq.s32.totalorder %v667, 1
        %v669 = vsel %vm668, %v658, 0.0
        %vm670 = vcmp.eq.s32.totalorder %v609, 0
        %v671 = vsel %vm670, 1, 0
        %vm672 = vcmp.eq.s32.totalorder %v671, 1
        %v673 = vlaneseq
        %v674 = vshrl.u32 %v673, 7
        %v675 = vsub.s32 0, %v674
        %v676 = vrot.slane %v663, %v675
        %v677 = vsel %vm672, %v676, %v606
        %vm678 = vcmp.eq.s32.totalorder %v609, 7
        %v679 = vsel %vm678, 1, 0
        %vm680 = vcmp.eq.s32.totalorder %v679, 1
        %v681 = vlaneseq
        %v682 = vshrl.u32 %v681, 7
        %v683 = vsub.s32 1, %v682
        %v684 = vrot.slane %v669, %v683
        %v685 = vsel %vm680, %v684, %v607
        %v686 = vpack.c.bf16 %v677, %v677
        %v687 = vld [vmem:[#allocation8] sm:$0xf]
        %v688 = vld [vmem:[#allocation8 + $0x4] sm:$0xf]
        %v689 = vld [vmem:[#allocation8 + $0x8] sm:$0xf]
        %v690 = vld [vmem:[#allocation8 + $0xc] sm:$0xf]
        %v691 = vld [vmem:[#allocation8 + $0x10] sm:$0xf]
        %v692 = vld [vmem:[#allocation8 + $0x14] sm:$0xf]
        %v693 = vld [vmem:[#allocation8 + $0x18] sm:$0xf]
        %v694 = vld [vmem:[#allocation8 + $0x1c] sm:$0xf]
        %v695 = vld [vmem:[#allocation8 + $0x20] sm:$0xf]
        %v696 = vld [vmem:[#allocation8 + $0x24] sm:$0xf]
        %v697 = vld [vmem:[#allocation8 + $0x28] sm:$0xf]
        %v698 = vld [vmem:[#allocation8 + $0x2c] sm:$0xf]
        %v699 = vld [vmem:[#allocation8 + $0x30] sm:$0xf]
        %v700 = vld [vmem:[#allocation8 + $0x34] sm:$0xf]
        %v701 = vld [vmem:[#allocation8 + $0x38] sm:$0xf]
        %v702 = vld [vmem:[#allocation8 + $0x3c] sm:$0xf]
        %v703 = vpack.c.bf16 %v595, %v595
        %s704 = scalar_lea.vmem [#allocation8], 64
        %v705 = vld [vmem:[%s704] sm:$0xf]
        %v706 = vld [vmem:[%s704 + $0x4] sm:$0xf]
        %v707 = vld [vmem:[%s704 + $0x8] sm:$0xf]
        %v708 = vld [vmem:[%s704 + $0xc] sm:$0xf]
        %v709 = vld [vmem:[%s704 + $0x10] sm:$0xf]
        %v710 = vld [vmem:[%s704 + $0x14] sm:$0xf]
        %v711 = vld [vmem:[%s704 + $0x18] sm:$0xf]
        %v712 = vld [vmem:[%s704 + $0x1c] sm:$0xf]
        %v713 = vld [vmem:[%s704 + $0x20] sm:$0xf]
        %v714 = vld [vmem:[%s704 + $0x24] sm:$0xf]
        %v715 = vld [vmem:[%s704 + $0x28] sm:$0xf]
        %v716 = vld [vmem:[%s704 + $0x2c] sm:$0xf]
        %v717 = vld [vmem:[%s704 + $0x30] sm:$0xf]
        %v718 = vld [vmem:[%s704 + $0x34] sm:$0xf]
        %v719 = vld [vmem:[%s704 + $0x38] sm:$0xf]
        %v720 = vld [vmem:[%s704 + $0x3c] sm:$0xf]
        %v737 = vunpack.c.l.b16 %v705
        %v738 = vunpack.c.l.b16 %v706
        %v739 = vunpack.c.l.b16 %v707
        %v740 = vunpack.c.l.b16 %v708
        %v741 = vunpack.c.l.b16 %v709
        %v742 = vunpack.c.l.b16 %v710
        %v743 = vunpack.c.l.b16 %v711
        %v744 = vunpack.c.l.b16 %v712
        %v745 = vunpack.c.l.b16 %v713
        %v746 = vunpack.c.l.b16 %v714
        %v747 = vunpack.c.l.b16 %v715
        %v748 = vunpack.c.l.b16 %v716
        %v749 = vunpack.c.l.b16 %v717
        %v750 = vunpack.c.l.b16 %v718
        %v751 = vunpack.c.l.b16 %v719
        %v752 = vunpack.c.l.b16 %v720
        %v753 = vpack.c.b16 %v738, %v737
        %v754 = vpack.c.b16 %v740, %v739
        %v755 = vpack.c.b16 %v742, %v741
        %v756 = vpack.c.b16 %v744, %v743
        %v757 = vpack.c.b16 %v746, %v745
        %v758 = vpack.c.b16 %v748, %v747
        %v759 = vpack.c.b16 %v750, %v749
        %v760 = vpack.c.b16 %v752, %v751
        %769 = vmatprep.subr.bf16.mxu0 0
        %770 = vmatpush1.bf16.msra.mxu0 %v760
        %771 = vmatprep.subr.bf16.mxu0 0
        %772 = vmatpush1.bf16.msra.mxu0 %v759
        %773 = vmatprep.subr.bf16.mxu0 0
        %774 = vmatpush1.bf16.msra.mxu0 %v758
        %775 = vmatprep.subr.bf16.mxu0 0
        %776 = vmatpush1.bf16.msra.mxu0 %v757
        %777 = vmatprep.subr.bf16.mxu0 0
        %778 = vmatpush1.bf16.msra.mxu0 %v756
        %779 = vmatprep.subr.bf16.mxu0 0
        %780 = vmatpush1.bf16.msra.mxu0 %v755
        %781 = vmatprep.subr.bf16.mxu0 0
        %782 = vmatpush1.bf16.msra.mxu0 %v754
        %783 = vmatprep.subr.bf16.mxu0 0
        %784 = vmatpush1.bf16.msra.mxu0 %v753
        %785 = vmatprep.subr.bf16.mxu0 0
        %786 = vmatpush2.bf16.msra.mxu0 0
        %787 = vmatprep.subr.bf16.mxu0 0
        %788 = vmatpush2.bf16.msra.mxu0 0
        %789 = vmatprep.subr.bf16.mxu0 0
        %790 = vmatpush2.bf16.msra.mxu0 0
        %791 = vmatprep.subr.bf16.mxu0 0
        %792 = vmatpush2.bf16.msra.mxu0 0
        %793 = vmatprep.subr.bf16.mxu0 0
        %794 = vmatpush2.bf16.msra.mxu0 0
        %795 = vmatprep.subr.bf16.mxu0 0
        %796 = vmatpush2.bf16.msra.mxu0 0
        %797 = vmatprep.subr.bf16.mxu0 0
        %798 = vmatpush2.bf16.msra.mxu0 0
        %799 = vmatprep.subr.bf16.mxu0 0
        %800 = vmatpush2.bf16.msra.mxu0 0
        %801 = vmatprep.mubr.bf16.mxu0 0
        %802 = vmatmul.mubr.bf16.gmra.mxu0 %v703
        %v803 = vpop.f32.mrf.mxu0
        %v804 = vadd.f32 0.0, %v803
        %v805 = vpop.f32.mrf.mxu0
        %v806 = vpop.f32.mrf.mxu0
        %v807 = vpop.f32.mrf.mxu0
        %808 = vdwg.mxu0
        %v825 = vunpack.c.l.b16 %v687
        %v826 = vunpack.c.l.b16 %v688
        %v827 = vunpack.c.l.b16 %v689
        %v828 = vunpack.c.l.b16 %v690
        %v829 = vunpack.c.l.b16 %v691
        %v830 = vunpack.c.l.b16 %v692
        %v831 = vunpack.c.l.b16 %v693
        %v832 = vunpack.c.l.b16 %v694
        %v833 = vunpack.c.l.b16 %v695
        %v834 = vunpack.c.l.b16 %v696
        %v835 = vunpack.c.l.b16 %v697
        %v836 = vunpack.c.l.b16 %v698
        %v837 = vunpack.c.l.b16 %v699
        %v838 = vunpack.c.l.b16 %v700
        %v839 = vunpack.c.l.b16 %v701
        %v840 = vunpack.c.l.b16 %v702
        %v841 = vpack.c.b16 %v826, %v825
        %v842 = vpack.c.b16 %v828, %v827
        %v843 = vpack.c.b16 %v830, %v829
        %v844 = vpack.c.b16 %v832, %v831
        %v845 = vpack.c.b16 %v834, %v833
        %v846 = vpack.c.b16 %v836, %v835
        %v847 = vpack.c.b16 %v838, %v837
        %v848 = vpack.c.b16 %v840, %v839
        %857 = vmatprep.subr.bf16.mxu0 0
        %858 = vmatpush1.bf16.msra.mxu0 %v848
        %859 = vmatprep.subr.bf16.mxu0 0
        %860 = vmatpush1.bf16.msra.mxu0 %v847
        %861 = vmatprep.subr.bf16.mxu0 0
        %862 = vmatpush1.bf16.msra.mxu0 %v846
        %863 = vmatprep.subr.bf16.mxu0 0
        %864 = vmatpush1.bf16.msra.mxu0 %v845
        %865 = vmatprep.subr.bf16.mxu0 0
        %866 = vmatpush1.bf16.msra.mxu0 %v844
        %867 = vmatprep.subr.bf16.mxu0 0
        %868 = vmatpush1.bf16.msra.mxu0 %v843
        %869 = vmatprep.subr.bf16.mxu0 0
        %870 = vmatpush1.bf16.msra.mxu0 %v842
        %871 = vmatprep.subr.bf16.mxu0 0
        %872 = vmatpush1.bf16.msra.mxu0 %v841
        %873 = vmatprep.subr.bf16.mxu0 0
        %874 = vmatpush2.bf16.msra.mxu0 0
        %875 = vmatprep.subr.bf16.mxu0 0
        %876 = vmatpush2.bf16.msra.mxu0 0
        %877 = vmatprep.subr.bf16.mxu0 0
        %878 = vmatpush2.bf16.msra.mxu0 0
        %879 = vmatprep.subr.bf16.mxu0 0
        %880 = vmatpush2.bf16.msra.mxu0 0
        %881 = vmatprep.subr.bf16.mxu0 0
        %882 = vmatpush2.bf16.msra.mxu0 0
        %883 = vmatprep.subr.bf16.mxu0 0
        %884 = vmatpush2.bf16.msra.mxu0 0
        %885 = vmatprep.subr.bf16.mxu0 0
        %886 = vmatpush2.bf16.msra.mxu0 0
        %887 = vmatprep.subr.bf16.mxu0 0
        %888 = vmatpush2.bf16.msra.mxu0 0
        %889 = vmatprep.mubr.bf16.mxu0 0
        %890 = vmatmul.mubr.bf16.gmra.mxu0 %v686
        %v891 = vpop.f32.mrf.mxu0
        %v892 = vadd.f32 %v804, %v891
        %v893 = vpop.f32.mrf.mxu0
        %v894 = vpop.f32.mrf.mxu0
        %v895 = vpop.f32.mrf.mxu0
        %896 = vdwg.mxu0
        %v897 = vpack.c.bf16 %v685, %v685
        %s898 = scalar_lea.vmem [#allocation8], 128
        %v899 = vld [vmem:[%s898] sm:$0xf]
        %v900 = vld [vmem:[%s898 + $0x4] sm:$0xf]
        %v901 = vld [vmem:[%s898 + $0x8] sm:$0xf]
        %v902 = vld [vmem:[%s898 + $0xc] sm:$0xf]
        %v903 = vld [vmem:[%s898 + $0x10] sm:$0xf]
        %v904 = vld [vmem:[%s898 + $0x14] sm:$0xf]
        %v905 = vld [vmem:[%s898 + $0x18] sm:$0xf]
        %v906 = vld [vmem:[%s898 + $0x1c] sm:$0xf]
        %v907 = vld [vmem:[%s898 + $0x20] sm:$0xf]
        %v908 = vld [vmem:[%s898 + $0x24] sm:$0xf]
        %v909 = vld [vmem:[%s898 + $0x28] sm:$0xf]
        %v910 = vld [vmem:[%s898 + $0x2c] sm:$0xf]
        %v911 = vld [vmem:[%s898 + $0x30] sm:$0xf]
        %v912 = vld [vmem:[%s898 + $0x34] sm:$0xf]
        %v913 = vld [vmem:[%s898 + $0x38] sm:$0xf]
        %v914 = vld [vmem:[%s898 + $0x3c] sm:$0xf]
        %v931 = vunpack.c.l.b16 %v899
        %v932 = vunpack.c.l.b16 %v900
        %v933 = vunpack.c.l.b16 %v901
        %v934 = vunpack.c.l.b16 %v902
        %v935 = vunpack.c.l.b16 %v903
        %v936 = vunpack.c.l.b16 %v904
        %v937 = vunpack.c.l.b16 %v905
        %v938 = vunpack.c.l.b16 %v906
        %v939 = vunpack.c.l.b16 %v907
        %v940 = vunpack.c.l.b16 %v908
        %v941 = vunpack.c.l.b16 %v909
        %v942 = vunpack.c.l.b16 %v910
        %v943 = vunpack.c.l.b16 %v911
        %v944 = vunpack.c.l.b16 %v912
        %v945 = vunpack.c.l.b16 %v913
        %v946 = vunpack.c.l.b16 %v914
        %v947 = vpack.c.b16 %v932, %v931
        %v948 = vpack.c.b16 %v934, %v933
        %v949 = vpack.c.b16 %v936, %v935
        %v950 = vpack.c.b16 %v938, %v937
        %v951 = vpack.c.b16 %v940, %v939
        %v952 = vpack.c.b16 %v942, %v941
        %v953 = vpack.c.b16 %v944, %v943
        %v954 = vpack.c.b16 %v946, %v945
        %963 = vmatprep.subr.bf16.mxu0 0
        %964 = vmatpush1.bf16.msra.mxu0 %v954
        %965 = vmatprep.subr.bf16.mxu0 0
        %966 = vmatpush1.bf16.msra.mxu0 %v953
        %967 = vmatprep.subr.bf16.mxu0 0
        %968 = vmatpush1.bf16.msra.mxu0 %v952
        %969 = vmatprep.subr.bf16.mxu0 0
        %970 = vmatpush1.bf16.msra.mxu0 %v951
        %971 = vmatprep.subr.bf16.mxu0 0
        %972 = vmatpush1.bf16.msra.mxu0 %v950
        %973 = vmatprep.subr.bf16.mxu0 0
        %974 = vmatpush1.bf16.msra.mxu0 %v949
        %975 = vmatprep.subr.bf16.mxu0 0
        %976 = vmatpush1.bf16.msra.mxu0 %v948
        %977 = vmatprep.subr.bf16.mxu0 0
        %978 = vmatpush1.bf16.msra.mxu0 %v947
        %979 = vmatprep.subr.bf16.mxu0 0
        %980 = vmatpush2.bf16.msra.mxu0 0
        %981 = vmatprep.subr.bf16.mxu0 0
        %982 = vmatpush2.bf16.msra.mxu0 0
        %983 = vmatprep.subr.bf16.mxu0 0
        %984 = vmatpush2.bf16.msra.mxu0 0
        %985 = vmatprep.subr.bf16.mxu0 0
        %986 = vmatpush2.bf16.msra.mxu0 0
        %987 = vmatprep.subr.bf16.mxu0 0
        %988 = vmatpush2.bf16.msra.mxu0 0
        %989 = vmatprep.subr.bf16.mxu0 0
        %990 = vmatpush2.bf16.msra.mxu0 0
        %991 = vmatprep.subr.bf16.mxu0 0
        %992 = vmatpush2.bf16.msra.mxu0 0
        %993 = vmatprep.subr.bf16.mxu0 0
        %994 = vmatpush2.bf16.msra.mxu0 0
        %995 = vmatprep.mubr.bf16.mxu0 0
        %996 = vmatmul.mubr.bf16.gmra.mxu0 %v897
        %v997 = vpop.f32.mrf.mxu0
        %v998 = vadd.f32 0.0, %v997
        %v999 = vpop.f32.mrf.mxu0
        %v1000 = vpop.f32.mrf.mxu0
        %v1001 = vpop.f32.mrf.mxu0
        %1002 = vdwg.mxu0
        %v1003 = vadd.f32 %v892, %v998
        %v1004 = vld [vmem:[%s6] sm:$0x1]
        %v1006 = vlaneseq
        %v1007 = vshrl.u32 %v1006, 7
        %v1008 = vsub.s32 0, %v1007
        %v1009 = vrot.slane %v1004, %v1008
        %v1011 = vadd.f32 %v1003, %v1009
        %v1012 = vmax.f32 %v1011, 0.0
        %v1013 = vpack.c.bf16 %v1012, %v1012
        %v1014 = vld [vmem:[#allocation10] sm:$0xf]
        %v1015 = vld [vmem:[#allocation10 + $0x4] sm:$0xf]
        %v1016 = vld [vmem:[#allocation10 + $0x8] sm:$0xf]
        %v1017 = vld [vmem:[#allocation10 + $0xc] sm:$0xf]
        %v1018 = vld [vmem:[#allocation10 + $0x10] sm:$0xf]
        %v1019 = vld [vmem:[#allocation10 + $0x14] sm:$0xf]
        %v1020 = vld [vmem:[#allocation10 + $0x18] sm:$0xf]
        %v1021 = vld [vmem:[#allocation10 + $0x1c] sm:$0xf]
        %v1022 = vld [vmem:[#allocation10 + $0x20] sm:$0xf]
        %v1023 = vld [vmem:[#allocation10 + $0x24] sm:$0xf]
        %v1024 = vld [vmem:[#allocation10 + $0x28] sm:$0xf]
        %v1025 = vld [vmem:[#allocation10 + $0x2c] sm:$0xf]
        %v1026 = vld [vmem:[#allocation10 + $0x30] sm:$0xf]
        %v1027 = vld [vmem:[#allocation10 + $0x34] sm:$0xf]
        %v1028 = vld [vmem:[#allocation10 + $0x38] sm:$0xf]
        %v1029 = vld [vmem:[#allocation10 + $0x3c] sm:$0xf]
        %v1030 = vld [vmem:[%s8] sm:$0x1]
        %v1032 = vlaneseq
        %v1033 = vshrl.u32 %v1032, 7
        %v1034 = vsub.s32 0, %v1033
        %v1035 = vrot.slane %v1030, %v1034
        %v1053 = vunpack.c.l.b16 %v1014
        %v1054 = vunpack.c.l.b16 %v1015
        %v1055 = vunpack.c.l.b16 %v1016
        %v1056 = vunpack.c.l.b16 %v1017
        %v1057 = vunpack.c.l.b16 %v1018
        %v1058 = vunpack.c.l.b16 %v1019
        %v1059 = vunpack.c.l.b16 %v1020
        %v1060 = vunpack.c.l.b16 %v1021
        %v1061 = vunpack.c.l.b16 %v1022
        %v1062 = vunpack.c.l.b16 %v1023
        %v1063 = vunpack.c.l.b16 %v1024
        %v1064 = vunpack.c.l.b16 %v1025
        %v1065 = vunpack.c.l.b16 %v1026
        %v1066 = vunpack.c.l.b16 %v1027
        %v1067 = vunpack.c.l.b16 %v1028
        %v1068 = vunpack.c.l.b16 %v1029
        %v1069 = vpack.c.b16 %v1054, %v1053
        %v1070 = vpack.c.b16 %v1056, %v1055
        %v1071 = vpack.c.b16 %v1058, %v1057
        %v1072 = vpack.c.b16 %v1060, %v1059
        %v1073 = vpack.c.b16 %v1062, %v1061
        %v1074 = vpack.c.b16 %v1064, %v1063
        %v1075 = vpack.c.b16 %v1066, %v1065
        %v1076 = vpack.c.b16 %v1068, %v1067
        %1085 = vmatprep.subr.bf16.mxu0 0
        %1086 = vmatpush1.bf16.msra.mxu0 %v1076
        %1087 = vmatprep.subr.bf16.mxu0 0
        %1088 = vmatpush1.bf16.msra.mxu0 %v1075
        %1089 = vmatprep.subr.bf16.mxu0 0
        %1090 = vmatpush1.bf16.msra.mxu0 %v1074
        %1091 = vmatprep.subr.bf16.mxu0 0
        %1092 = vmatpush1.bf16.msra.mxu0 %v1073
        %1093 = vmatprep.subr.bf16.mxu0 0
        %1094 = vmatpush1.bf16.msra.mxu0 %v1072
        %1095 = vmatprep.subr.bf16.mxu0 0
        %1096 = vmatpush1.bf16.msra.mxu0 %v1071
        %1097 = vmatprep.subr.bf16.mxu0 0
        %1098 = vmatpush1.bf16.msra.mxu0 %v1070
        %1099 = vmatprep.subr.bf16.mxu0 0
        %1100 = vmatpush1.bf16.msra.mxu0 %v1069
        %1101 = vmatprep.subr.bf16.mxu0 0
        %1102 = vmatpush2.bf16.msra.mxu0 0
        %1103 = vmatprep.subr.bf16.mxu0 0
        %1104 = vmatpush2.bf16.msra.mxu0 0
        %1105 = vmatprep.subr.bf16.mxu0 0
        %1106 = vmatpush2.bf16.msra.mxu0 0
        %1107 = vmatprep.subr.bf16.mxu0 0
        %1108 = vmatpush2.bf16.msra.mxu0 0
        %1109 = vmatprep.subr.bf16.mxu0 0
        %1110 = vmatpush2.bf16.msra.mxu0 0
        %1111 = vmatprep.subr.bf16.mxu0 0
        %1112 = vmatpush2.bf16.msra.mxu0 0
        %1113 = vmatprep.subr.bf16.mxu0 0
        %1114 = vmatpush2.bf16.msra.mxu0 0
        %1115 = vmatprep.subr.bf16.mxu0 0
        %1116 = vmatpush2.bf16.msra.mxu0 0
        %1117 = vmatprep.mubr.bf16.mxu0 0
        %1118 = vmatmul.mubr.bf16.gmra.mxu0 %v1013
        %v1119 = vpop.f32.mrf.mxu0
        %v1120 = vadd.f32 %v1035, %v1119
        %v1121 = vpop.f32.mrf.mxu0
        %v1122 = vpop.f32.mrf.mxu0
        %v1123 = vpop.f32.mrf.mxu0
        %1124 = vdwg.mxu0
        %v1125 = vld [vmem:[%s446] sm:$0xf]
        %v1126 = vunpack.c.l.bf16 %v1125
        %v1127 = vadd.f32 %v1120, %v1126
        %v1128 = vmax.f32 %v1127, 0.0
        %v1129 = vpack.c.bf16 %v1128, %v1128
        %1130 = vst [vmem:[%s446] sm:$0xf] %v1129
        %s1131 = sand.u32 %s255, 1
        %s1132 = scalar_lea.sflag [#allocation4], %s1131
        %s1133 = sand.u32 %s255, 1
        %s1134 = smul.addr %s1133, 4
        %s1135 = scalar_lea.vmem [#allocation11], %s1134
        // Predicated region
        $region77: #{tpu_custom_call.1} parent=55 // pred_check
          %p1136 = pneg %p265
        $region78: #{tpu_custom_call.1} parent=55 // pred_check_branch
          %1138 = sbr.rel (%p1136) target = $region80
        $region79: #{tpu_custom_call.1} parent=55 // pred_region
          %s1140 = ssub.s32 64, 64
          %1141 = vsyncadd %s1132, %s1140
          %s1142 = smul.addr %s34, 2
          %s1143 = sadd.s32 %s35, %s1142
          %s1144 = smul.addr %s1143, 64
          %s1145 = scalar_lea.hbm %s9, %s1144
          %s1147 = sshll.u32 %s1135, 4
          %s1148 = int_to_ptr.vmem [resolvable:$true] %s1147
          %1150 = dma.vmem_to_hbm [thread:$0]  %s1148, 64, %s1145, %s1132
        $region80: #{tpu_custom_call.1} parent=55 // pred_fallthru
          _
      $region56: #{tpu_custom_call.1} parent=5 // pred_fallthru
        _
      %p1151 = scmp.le.s32.totalorder 2, %s25
      // Predicated region
      $region81: #{tpu_custom_call.1} parent=5 // pred_check
        %p1152 = pneg %p1151
      $region82: #{tpu_custom_call.1} parent=5 // pred_check_branch
        %1154 = sbr.rel (%p1152) target = $region84
      $region83: #{tpu_custom_call.1} parent=5 // pred_region
        %s1155 = ssub.s32 %s25, 2
        // Predicated region
        $region85: #{tpu_custom_call.1} parent=83 // pred_check
          %p1156 = pneg %p271
        $region86: #{tpu_custom_call.1} parent=83 // pred_check_branch
          %1158 = sbr.rel (%p1156) target = $region88
        $region87: #{tpu_custom_call.1} parent=83 // pred_region
          %s1159 = sand.u32 %s256, 1
          %s1160 = scalar_lea.sflag [#allocation4], %s1159
          %s1161 = sand.u32 %s256, 1
          %s1162 = smul.addr %s1161, 4
          %s1163 = scalar_lea.vmem [#allocation11], %s1162
          %1164 = dma.done %s1160, 64
        $region88: #{tpu_custom_call.1} parent=83 // pred_fallthru
          _
      $region84: #{tpu_custom_call.1} parent=5 // pred_fallthru
        _
    $region6: #{tpu_custom_call.1} parent=1 // loop_footer
      %s29 = sadd.s32 1, %s25
    $region7: #{tpu_custom_call.1} parent=1 // loop_footer_branch
      %24 = sbr.rel target = $region3
    $region8: #{tpu_custom_call.1} parent=1 // loop_exit
      _
    %1165 = vsyncpa [#allocation3], 1
    %s1166 = scalar_lea.sflag [#allocation3], 1
    %1167 = vsyncpa %s1166, 1
    %1168 = vsyncpa [#allocation6], 1
    %s1169 = scalar_lea.sflag [#allocation6], 1
    %1170 = vsyncpa %s1169, 1
    %1171 = vsyncpa [#allocation9], 1
    %1172 = vsyncpa [#allocation4], 1
    %s1173 = scalar_lea.sflag [#allocation4], 1
    %1174 = vsyncpa %s1173, 1

// kernel: tpu_custom_call.1
$region0: #{tpu_custom_call.1}
  #allocation0 [shape = 'u32[]', space=smem, size = 0x4, offset = 0x4, fixed_abs, tag = 'smem constant byte address 0x4 - core index']
  #allocation1 [shape = 'u32[144,128]{1,0:T(1,128)}', space=vmem, size = 0x12000, scoped, tag = 'internal scratch']
  %s0 = inlined_call_operand.hbm [shape: bf16[2,16,128], index: 0, kind: input, shape index: {}]
  %s1 = inlined_call_operand.hbm [shape: bf16[2,2,2,128], index: 1, kind: input, shape index: {}]
  %s2 = inlined_call_operand.hbm [shape: bf16[128,256], index: 2, kind: input, shape index: {}]
  %s3 = inlined_call_operand.vmem [shape: f32[1,128], index: 3, kind: input, shape index: {}]
  %s4 = inlined_call_operand.vmem [shape: f32[1,128], index: 4, kind: input, shape index: {}]
  %s5 = inlined_call_operand.hbm [shape: bf16[3,128,128], index: 5, kind: input, shape index: {}]
  %s6 = inlined_call_operand.vmem [shape: f32[1,128], index: 6, kind: input, shape index: {}]
  %s7 = inlined_call_operand.hbm [shape: bf16[128,128], index: 7, kind: input, shape index: {}]
  %s8 = inlined_call_operand.vmem [shape: f32[1,128], index: 8, kind: input, shape index: {}]
  %s9 = inlined_call_operand.hbm [shape: bf16[2,16,128], index: 9, kind: output, shape index: {}]
  %s10 = sld [smem:[#allocation0]]
  $region89: #{tpu_custom_call.1} parent=0
    _
  %s12 = ssub.s32 1, %s10
  %s13 = scalar_select 0, %s12, %s10
  $region1: #{tpu_custom_call.1} parent=0
    #allocation2 [shape = 'u8[4096]{0}', space=vmem, size = 0x1000, scoped, tag = 'input window, operand 0']
    #allocation3 [shape = 's32[2]{0}', space=sflag, size = 0x8, scoped, tag = 'scoped memory for tpu_custom_call.1']
    #allocation4 [shape = 's32[2]{0}', space=sflag, size = 0x8, scoped, tag = 'scoped memory for tpu_custom_call.1']
    #allocation5 [shape = 'u8[1024]{0}', space=vmem, size = 0x400, scoped, tag = 'input window, operand 1']
    #allocation6 [shape = 's32[2]{0}', space=sflag, size = 0x8, scoped, tag = 'scoped memory for tpu_custom_call.1']
    #allocation7 [shape = 'u8[65536]{0}', space=vmem, size = 0x10000, scoped, tag = 'input window, operand 2, single buffered']
    #allocation8 [shape = 'u8[98304]{0}', space=vmem, size = 0x18000, scoped, tag = 'input window, operand 5, single buffered']
    #allocation9 [shape = 's32[1]{0}', space=sflag, size = 0x4, scoped, tag = 'scoped memory for tpu_custom_call.1']
    #allocation10 [shape = 'u8[32768]{0}', space=vmem, size = 0x8000, scoped, tag = 'input window, operand 7, single buffered']
    #allocation11 [shape = 'u8[4096]{0}', space=vmem, size = 0x1000, scoped, tag = 'output window, operand 0']
    %14 = vsyncpa [#allocation3], 0
    %s15 = scalar_lea.sflag [#allocation3], 1
    %16 = vsyncpa %s15, 0
    %17 = vsyncpa [#allocation6], 0
    %s18 = scalar_lea.sflag [#allocation6], 1
    %19 = vsyncpa %s18, 0
    %20 = vsyncpa [#allocation9], 0
    %21 = vsyncpa [#allocation4], 0
    %s22 = scalar_lea.sflag [#allocation4], 1
    %23 = vsyncpa %s22, 0
    loop: start=0, step=1, limit=6
    $region2: #{tpu_custom_call.1} parent=1 // loop_pre_header
      _
    $region3: #{tpu_custom_call.1} parent=1 // loop_header
      %s25 = sphi 0, %s29
      %p26 = scmp.ge.s32.totalorder %s25, 6
      %s32 = sphi 0, %s44
      %s33 = sphi 0, %s40
      %s34 = sphi 0, %s32
      %s35 = sphi 0, %s33
      %s36 = sphi 0, %s34
      %s37 = sphi 0, %s35
      %s49 = sphi 0, %s51
      %s52 = sphi 0, %s49
      %s53 = sphi 0, %s52
      %s69 = sphi 0, %s53
      %s77 = sphi 0, %s79
      %s80 = sphi 0, %s77
      %s81 = sphi 0, %s80
      %s97 = sphi 0, %s81
      %s101 = sphi 0, %s101
      %s103 = sphi 0, %s101
      %s104 = sphi 0, %s103
      %s118 = sphi 0, %s104
      %s122 = sphi 0, %s122
      %s124 = sphi 0, %s122
      %s125 = sphi 0, %s124
      %s139 = sphi 0, %s125
      %s143 = sphi 0, %s143
      %s145 = sphi 0, %s143
      %s146 = sphi 0, %s145
      %s160 = sphi 0, %s146
      %s164 = sphi 0, %s164
      %s166 = sphi 0, %s164
      %s167 = sphi 0, %s166
      %s181 = sphi 0, %s167
      %s185 = sphi 0, %s185
      %s187 = sphi 0, %s185
      %s188 = sphi 0, %s187
      %s202 = sphi 0, %s188
      %s206 = sphi 0, %s206
      %s208 = sphi 0, %s206
      %s209 = sphi 0, %s208
      %s223 = sphi 0, %s209
      %s227 = sphi 0, %s227
      %s229 = sphi 0, %s227
      %s230 = sphi 0, %s229
      %s244 = sphi 0, %s230
      %s252 = sphi 0, %s254
      %s255 = sphi 0, %s252
      %s256 = sphi 0, %s255
      %s272 = sphi 0, %s256
    $region4: #{tpu_custom_call.1} parent=1 // loop_header_branch
      %28 = sbr.rel (%p26) target = $region8
    $region5: #{tpu_custom_call.1} parent=1 // loop_body
      %s30 = ssub.s32 %s25, 1
      %s31 = ssub.s32 %s25, 2
      %s38 = sadd.s32 1, %s33
      %p39 = scmp.ge.s32.totalorder %s38, 2
      %s40 = scalar_select %p39, 0, %s38
      %s41 = sadd.s32 1, %s32
      %s42 = scalar_select %p39, %s41, %s32
      %p43 = scmp.ge.s32.totalorder %s42, 2
      %s44 = scalar_select %p43, 0, %s42
      %s45 = ssub.s32 %s32, %s44
      %s46 = ssub.s32 %s33, %s40
      %s47 = sor.u32 %s45, %s46
      %p48 = scmp.eq.s32.totalorder %s47, 0
      %s50 = sadd.s32 %s49, 1
      %s51 = scalar_select %p48, %s49, %s50
      %p54 = pneg %p48
      %p55 = scmp.eq.s32.totalorder %s25, 3
      %p56 = por %p54, %p55
      %p57 = scmp.ne.s32.totalorder %s49, %s52
      %p58 = scmp.eq.s32.totalorder %s25, 0
      %p59 = por %p57, %p58
      %p60 = scmp.ne.s32.totalorder %s49, %s52
      %p61 = scmp.eq.s32.totalorder %s30, 3
      %p62 = por %p60, %p61
      %p63 = scmp.ne.s32.totalorder %s52, %s53
      %p64 = scmp.eq.s32.totalorder %s30, 0
      %p65 = por %p63, %p64
      %p66 = scmp.ne.s32.totalorder %s52, %s53
      %p67 = scmp.eq.s32.totalorder %s31, 3
      %p68 = por %p66, %p67
      %p70 = scmp.ne.s32.totalorder %s53, %s69
      %p71 = scmp.eq.s32.totalorder %s31, 0
      %p72 = por %p70, %p71
      %s73 = ssub.s32 %s32, %s44
      %s74 = ssub.s32 %s33, %s40
      %s75 = sor.u32 %s73, %s74
      %p76 = scmp.eq.s32.totalorder %s75, 0
      %s78 = sadd.s32 %s77, 1
      %s79 = scalar_select %p76, %s77, %s78
      %p82 = pneg %p76
      %p83 = scmp.eq.s32.totalorder %s25, 3
      %p84 = por %p82, %p83
      %p85 = scmp.ne.s32.totalorder %s77, %s80
      %p86 = scmp.eq.s32.totalorder %s25, 0
      %p87 = por %p85, %p86
      %p88 = scmp.ne.s32.totalorder %s77, %s80
      %p89 = scmp.eq.s32.totalorder %s30, 3
      %p90 = por %p88, %p89
      %p91 = scmp.ne.s32.totalorder %s80, %s81
      %p92 = scmp.eq.s32.totalorder %s30, 0
      %p93 = por %p91, %p92
      %p94 = scmp.ne.s32.totalorder %s80, %s81
      %p95 = scmp.eq.s32.totalorder %s31, 3
      %p96 = por %p94, %p95
      %p98 = scmp.ne.s32.totalorder %s81, %s97
      %p99 = scmp.eq.s32.totalorder %s31, 0
      %p100 = por %p98, %p99
      %s102 = sadd.s32 %s101, 1
      %p105 = scmp.eq.s32.totalorder %s25, 3
      %p106 = scmp.ne.s32.totalorder %s101, %s103
      %p107 = scmp.eq.s32.totalorder %s25, 0
      %p108 = por %p106, %p107
      %p109 = scmp.ne.s32.totalorder %s101, %s103
      %p110 = scmp.eq.s32.totalorder %s30, 3
      %p111 = por %p109, %p110
      %p112 = scmp.ne.s32.totalorder %s103, %s104
      %p113 = scmp.eq.s32.totalorder %s30, 0
      %p114 = por %p112, %p113
      %p115 = scmp.ne.s32.totalorder %s103, %s104
      %p116 = scmp.eq.s32.totalorder %s31, 3
      %p117 = por %p115, %p116
      %p119 = scmp.ne.s32.totalorder %s104, %s118
      %p120 = scmp.eq.s32.totalorder %s31, 0
      %p121 = por %p119, %p120
      %s123 = sadd.s32 %s122, 1
      %p126 = scmp.eq.s32.totalorder %s25, 3
      %p127 = scmp.ne.s32.totalorder %s122, %s124
      %p128 = scmp.eq.s32.totalorder %s25, 0
      %p129 = por %p127, %p128
      %p130 = scmp.ne.s32.totalorder %s122, %s124
      %p131 = scmp.eq.s32.totalorder %s30, 3
      %p132 = por %p130, %p131
      %p133 = scmp.ne.s32.totalorder %s124, %s125
      %p134 = scmp.eq.s32.totalorder %s30, 0
      %p135 = por %p133, %p134
      %p136 = scmp.ne.s32.totalorder %s124, %s125
      %p137 = scmp.eq.s32.totalorder %s31, 3
      %p138 = por %p136, %p137
      %p140 = scmp.ne.s32.totalorder %s125, %s139
      %p141 = scmp.eq.s32.totalorder %s31, 0
      %p142 = por %p140, %p141
      %s144 = sadd.s32 %s143, 1
      %p147 = scmp.eq.s32.totalorder %s25, 3
      %p148 = scmp.ne.s32.totalorder %s143, %s145
      %p149 = scmp.eq.s32.totalorder %s25, 0
      %p150 = por %p148, %p149
      %p151 = scmp.ne.s32.totalorder %s143, %s145
      %p152 = scmp.eq.s32.totalorder %s30, 3
      %p153 = por %p151, %p152
      %p154 = scmp.ne.s32.totalorder %s145, %s146
      %p155 = scmp.eq.s32.totalorder %s30, 0
      %p156 = por %p154, %p155
      %p157 = scmp.ne.s32.totalorder %s145, %s146
      %p158 = scmp.eq.s32.totalorder %s31, 3
      %p159 = por %p157, %p158
      %p161 = scmp.ne.s32.totalorder %s146, %s160
      %p162 = scmp.eq.s32.totalorder %s31, 0
      %p163 = por %p161, %p162
      %s165 = sadd.s32 %s164, 1
      %p168 = scmp.eq.s32.totalorder %s25, 3
      %p169 = scmp.ne.s32.totalorder %s164, %s166
      %p170 = scmp.eq.s32.totalorder %s25, 0
      %p171 = por %p169, %p170
      %p172 = scmp.ne.s32.totalorder %s164, %s166
      %p173 = scmp.eq.s32.totalorder %s30, 3
      %p174 = por %p172, %p173
      %p175 = scmp.ne.s32.totalorder %s166, %s167
      %p176 = scmp.eq.s32.totalorder %s30, 0
      %p177 = por %p175, %p176
      %p178 = scmp.ne.s32.totalorder %s166, %s167
      %p179 = scmp.eq.s32.totalorder %s31, 3
      %p180 = por %p178, %p179
      %p182 = scmp.ne.s32.totalorder %s167, %s181
      %p183 = scmp.eq.s32.totalorder %s31, 0
      %p184 = por %p182, %p183
      %s186 = sadd.s32 %s185, 1
      %p189 = scmp.eq.s32.totalorder %s25, 3
      %p190 = scmp.ne.s32.totalorder %s185, %s187
      %p191 = scmp.eq.s32.totalorder %s25, 0
      %p192 = por %p190, %p191
      %p193 = scmp.ne.s32.totalorder %s185, %s187
      %p194 = scmp.eq.s32.totalorder %s30, 3
      %p195 = por %p193, %p194
      %p196 = scmp.ne.s32.totalorder %s187, %s188
      %p197 = scmp.eq.s32.totalorder %s30, 0
      %p198 = por %p196, %p197
      %p199 = scmp.ne.s32.totalorder %s187, %s188
      %p200 = scmp.eq.s32.totalorder %s31, 3
      %p201 = por %p199, %p200
      %p203 = scmp.ne.s32.totalorder %s188, %s202
      %p204 = scmp.eq.s32.totalorder %s31, 0
      %p205 = por %p203, %p204
      %s207 = sadd.s32 %s206, 1
      %p210 = scmp.eq.s32.totalorder %s25, 3
      %p211 = scmp.ne.s32.totalorder %s206, %s208
      %p212 = scmp.eq.s32.totalorder %s25, 0
      %p213 = por %p211, %p212
      %p214 = scmp.ne.s32.totalorder %s206, %s208
      %p215 = scmp.eq.s32.totalorder %s30, 3
      %p216 = por %p214, %p215
      %p217 = scmp.ne.s32.totalorder %s208, %s209
      %p218 = scmp.eq.s32.totalorder %s30, 0
      %p219 = por %p217, %p218
      %p220 = scmp.ne.s32.totalorder %s208, %s209
      %p221 = scmp.eq.s32.totalorder %s31, 3
      %p222 = por %p220, %p221
      %p224 = scmp.ne.s32.totalorder %s209, %s223
      %p225 = scmp.eq.s32.totalorder %s31, 0
      %p226 = por %p224, %p225
      %s228 = sadd.s32 %s227, 1
      %p231 = scmp.eq.s32.totalorder %s25, 3
      %p232 = scmp.ne.s32.totalorder %s227, %s229
      %p233 = scmp.eq.s32.totalorder %s25, 0
      %p234 = por %p232, %p233
      %p235 = scmp.ne.s32.totalorder %s227, %s229
      %p236 = scmp.eq.s32.totalorder %s30, 3
      %p237 = por %p235, %p236
      %p238 = scmp.ne.s32.totalorder %s229, %s230
      %p239 = scmp.eq.s32.totalorder %s30, 0
      %p240 = por %p238, %p239
      %p241 = scmp.ne.s32.totalorder %s229, %s230
      %p242 = scmp.eq.s32.totalorder %s31, 3
      %p243 = por %p241, %p242
      %p245 = scmp.ne.s32.totalorder %s230, %s244
      %p246 = scmp.eq.s32.totalorder %s31, 0
      %p247 = por %p245, %p246
      %s248 = ssub.s32 %s32, %s44
      %s249 = ssub.s32 %s33, %s40
      %s250 = sor.u32 %s248, %s249
      %p251 = scmp.eq.s32.totalorder %s250, 0
      %s253 = sadd.s32 %s252, 1
      %s254 = scalar_select %p251, %s252, %s253
      %p257 = pneg %p251
      %p258 = scmp.eq.s32.totalorder %s25, 3
      %p259 = por %p257, %p258
      %p260 = scmp.ne.s32.totalorder %s252, %s255
      %p261 = scmp.eq.s32.totalorder %s25, 0
      %p262 = por %p260, %p261
      %p263 = scmp.ne.s32.totalorder %s252, %s255
      %p264 = scmp.eq.s32.totalorder %s30, 3
      %p265 = por %p263, %p264
      %p266 = scmp.ne.s32.totalorder %s255, %s256
      %p267 = scmp.eq.s32.totalorder %s30, 0
      %p268 = por %p266, %p267
      %p269 = scmp.ne.s32.totalorder %s255, %s256
      %p270 = scmp.eq.s32.totalorder %s31, 3
      %p271 = por %p269, %p270
      %p273 = scmp.ne.s32.totalorder %s256, %s272
      %p274 = scmp.eq.s32.totalorder %s31, 0
      %p275 = por %p273, %p274
      %p276 = scmp.le.s32.totalorder 1, %s25
      %p277 = scmp.lt.s32.totalorder %s25, 5
      %p278 = pnand %p276, %p277
      %p279 = pneg %p278
      // Predicated region
      $region9: #{tpu_custom_call.1} parent=5 // pred_check
        _
      $region10: #{tpu_custom_call.1} parent=5 // pred_check_branch
        %281 = sbr.rel (%p278) target = $region12
      $region11: #{tpu_custom_call.1} parent=5 // pred_region
        %s282 = ssub.s32 %s25, 1
        // Predicated region
        $region13: #{tpu_custom_call.1} parent=11 // pred_check
          %p283 = pneg %p114
        $region14: #{tpu_custom_call.1} parent=11 // pred_check_branch
          %285 = sbr.rel (%p283) target = $region16
        $region15: #{tpu_custom_call.1} parent=11 // pred_region
          %s287 = ssub.s32 2048, 2048
          %288 = vsyncadd [#allocation6], %s287
          %s289 = sshll.u32 [#allocation7], 4
          %s290 = int_to_ptr.vmem [resolvable:$true] %s289
          %295 = dma.hbm_to_vmem [thread:$0]  %s2, 2048, %s290, [#allocation6], 128, 128, 8
        $region16: #{tpu_custom_call.1} parent=11 // pred_fallthru
          _
        // Predicated region
        $region17: #{tpu_custom_call.1} parent=11 // pred_check
          %p296 = pneg %p135
        $region18: #{tpu_custom_call.1} parent=11 // pred_check_branch
          %298 = sbr.rel (%p296) target = $region20
        $region19: #{tpu_custom_call.1} parent=11 // pred_region
          _
        $region20: #{tpu_custom_call.1} parent=11 // pred_fallthru
          _
        // Predicated region
        $region21: #{tpu_custom_call.1} parent=11 // pred_check
          %p299 = pneg %p156
        $region22: #{tpu_custom_call.1} parent=11 // pred_check_branch
          %301 = sbr.rel (%p299) target = $region24
        $region23: #{tpu_custom_call.1} parent=11 // pred_region
          _
        $region24: #{tpu_custom_call.1} parent=11 // pred_fallthru
          _
        // Predicated region
        $region25: #{tpu_custom_call.1} parent=11 // pred_check
          %p302 = pneg %p177
        $region26: #{tpu_custom_call.1} parent=11 // pred_check_branch
          %304 = sbr.rel (%p302) target = $region28
        $region27: #{tpu_custom_call.1} parent=11 // pred_region
          %s306 = ssub.s32 3072, 3072
          %307 = vsyncadd [#allocation9], %s306
          %s308 = sshll.u32 [#allocation8], 4
          %s309 = int_to_ptr.vmem [resolvable:$true] %s308
          %314 = dma.hbm_to_vmem [thread:$0]  %s5, 3072, %s309, [#allocation9], 64, 64, 4
        $region28: #{tpu_custom_call.1} parent=11 // pred_fallthru
          _
        // Predicated region
        $region29: #{tpu_custom_call.1} parent=11 // pred_check
          %p315 = pneg %p198
        $region30: #{tpu_custom_call.1} parent=11 // pred_check_branch
          %317 = sbr.rel (%p315) target = $region32
        $region31: #{tpu_custom_call.1} parent=11 // pred_region
          _
        $region32: #{tpu_custom_call.1} parent=11 // pred_fallthru
          _
        // Predicated region
        $region33: #{tpu_custom_call.1} parent=11 // pred_check
          %p318 = pneg %p219
        $region34: #{tpu_custom_call.1} parent=11 // pred_check_branch
          %320 = sbr.rel (%p318) target = $region36
        $region35: #{tpu_custom_call.1} parent=11 // pred_region
          %s322 = ssub.s32 1024, 1024
          %323 = vsyncadd [#allocation9], %s322
          %s324 = sshll.u32 [#allocation10], 4
          %s325 = int_to_ptr.vmem [resolvable:$true] %s324
          %330 = dma.hbm_to_vmem [thread:$0]  %s7, 1024, %s325, [#allocation9], 64, 64, 4
        $region36: #{tpu_custom_call.1} parent=11 // pred_fallthru
          _
        // Predicated region
        $region37: #{tpu_custom_call.1} parent=11 // pred_check
          %p331 = pneg %p240
        $region38: #{tpu_custom_call.1} parent=11 // pred_check_branch
          %333 = sbr.rel (%p331) target = $region40
        $region39: #{tpu_custom_call.1} parent=11 // pred_region
          _
        $region40: #{tpu_custom_call.1} parent=11 // pred_fallthru
          _
      $region12: #{tpu_custom_call.1} parent=5 // pred_fallthru
        _
      %p334 = scmp.lt.s32.totalorder %s25, 4
      // Predicated region
      $region41: #{tpu_custom_call.1} parent=5 // pred_check
        %p335 = pneg %p334
      $region42: #{tpu_custom_call.1} parent=5 // pred_check_branch
        %337 = sbr.rel (%p335) target = $region44
      $region43: #{tpu_custom_call.1} parent=5 // pred_region
        // Predicated region
        $region45: #{tpu_custom_call.1} parent=43 // pred_check
          %p338 = pneg %p59
        $region46: #{tpu_custom_call.1} parent=43 // pred_check_branch
          %340 = sbr.rel (%p338) target = $region48
        $region47: #{tpu_custom_call.1} parent=43 // pred_region
          %s341 = sand.u32 %s49, 1
          %s342 = scalar_lea.sflag [#allocation3], %s341
          %s343 = sand.u32 %s49, 1
          %s344 = smul.addr %s343, 4
          %s345 = scalar_lea.vmem [#allocation2], %s344
          %s347 = ssub.s32 64, 64
          %348 = vsyncadd %s342, %s347
          %s349 = smul.addr %s32, 2
          %s350 = sadd.s32 %s33, %s349
          %s351 = smul.addr %s350, 64
          %s352 = scalar_lea.hbm %s0, %s351
          %s354 = sshll.u32 %s345, 4
          %s355 = int_to_ptr.vmem [resolvable:$true] %s354
          %357 = dma.hbm_to_vmem [thread:$0]  %s352, 64, %s355, %s342
        $region48: #{tpu_custom_call.1} parent=43 // pred_fallthru
          _
        // Predicated region
        $region49: #{tpu_custom_call.1} parent=43 // pred_check
          %p358 = pneg %p87
        $region50: #{tpu_custom_call.1} parent=43 // pred_check_branch
          %360 = sbr.rel (%p358) target = $region52
        $region51: #{tpu_custom_call.1} parent=43 // pred_region
          %s361 = sand.u32 %s25, 1
          %s362 = scalar_lea.sflag [#allocation6], %s361
          %s363 = sand.u32 %s77, 1
          %s364 = scalar_lea.vmem [#allocation5], %s363
          %s366 = ssub.s32 16, 16
          %367 = vsyncadd %s362, %s366
          %s368 = smul.addr %s32, 2
          %s369 = sadd.s32 %s33, %s368
          %s370 = smul.addr %s369, 16
          %s371 = scalar_lea.hbm %s1, %s370
          %s373 = sshll.u32 %s364, 4
          %s374 = int_to_ptr.vmem [resolvable:$true] %s373
          %376 = dma.hbm_to_vmem [thread:$0]  %s371, 16, %s374, %s362
        $region52: #{tpu_custom_call.1} parent=43 // pred_fallthru
          _
      $region44: #{tpu_custom_call.1} parent=5 // pred_fallthru
        _
      %p377 = scmp.le.s32.totalorder 1, %s25
      %p378 = scmp.lt.s32.totalorder %s25, 5
      %p379 = pnand %p377, %p378
      %p380 = pneg %p379
      // Predicated region
      $region53: #{tpu_custom_call.1} parent=5 // pred_check
        _
      $region54: #{tpu_custom_call.1} parent=5 // pred_check_branch
        %382 = sbr.rel (%p379) target = $region56
      $region55: #{tpu_custom_call.1} parent=5 // pred_region
        %s383 = ssub.s32 %s25, 1
        %s384 = sand.u32 %s52, 1
        %s385 = scalar_lea.sflag [#allocation3], %s384
        %s386 = sand.u32 %s52, 1
        %s387 = smul.addr %s386, 4
        %s388 = scalar_lea.vmem [#allocation2], %s387
        // Predicated region
        $region57: #{tpu_custom_call.1} parent=55 // pred_check
          %p389 = pneg %p65
        $region58: #{tpu_custom_call.1} parent=55 // pred_check_branch
          %391 = sbr.rel (%p389) target = $region60
        $region59: #{tpu_custom_call.1} parent=55 // pred_region
          %392 = dma.done %s385, 64
        $region60: #{tpu_custom_call.1} parent=55 // pred_fallthru
          _
        %s393 = sand.u32 %s30, 1
        %s394 = scalar_lea.sflag [#allocation6], %s393
        %s395 = sand.u32 %s80, 1
        %s396 = scalar_lea.vmem [#allocation5], %s395
        // Predicated region
        $region61: #{tpu_custom_call.1} parent=55 // pred_check
          %p397 = pneg %p93
        $region62: #{tpu_custom_call.1} parent=55 // pred_check_branch
          %399 = sbr.rel (%p397) target = $region64
        $region63: #{tpu_custom_call.1} parent=55 // pred_region
          %400 = dma.done %s394, 16
        $region64: #{tpu_custom_call.1} parent=55 // pred_fallthru
          _
        // Predicated region
        $region65: #{tpu_custom_call.1} parent=55 // pred_check
          %p401 = pneg %p114
        $region66: #{tpu_custom_call.1} parent=55 // pred_check_branch
          %403 = sbr.rel (%p401) target = $region68
        $region67: #{tpu_custom_call.1} parent=55 // pred_region
          %404 = dma.done [#allocation6], 2048
        $region68: #{tpu_custom_call.1} parent=55 // pred_fallthru
          _
        // Predicated region
        $region69: #{tpu_custom_call.1} parent=55 // pred_check
          %p405 = pneg %p177
        $region70: #{tpu_custom_call.1} parent=55 // pred_check_branch
          %407 = sbr.rel (%p405) target = $region72
        $region71: #{tpu_custom_call.1} parent=55 // pred_region
          %408 = dma.done [#allocation9], 3072
        $region72: #{tpu_custom_call.1} parent=55 // pred_fallthru
          _
        // Predicated region
        $region73: #{tpu_custom_call.1} parent=55 // pred_check
          %p409 = pneg %p219
        $region74: #{tpu_custom_call.1} parent=55 // pred_check_branch
          %411 = sbr.rel (%p409) target = $region76
        $region75: #{tpu_custom_call.1} parent=55 // pred_region
          %412 = dma.done [#allocation9], 1024
        $region76: #{tpu_custom_call.1} parent=55 // pred_fallthru
          _
        %s413 = sand.u32 %s52, 1
        %s414 = scalar_lea.sflag [#allocation3], %s413
        %s415 = sand.u32 %s52, 1
        %s416 = smul.addr %s415, 4
        %s417 = scalar_lea.vmem [#allocation2], %s416
        %p418 = pneg %p65
        %p419 = pneg %p62
        %s420 = sand.u32 %s30, 1
        %s421 = scalar_lea.sflag [#allocation6], %s420
        %s422 = sand.u32 %s80, 1
        %s423 = scalar_lea.vmem [#allocation5], %s422
        %p424 = pneg %p93
        %p425 = pneg %p90
        %p426 = pneg %p114
        %p427 = pneg %p111
        %p428 = pneg %p135
        %p429 = pneg %p132
        %p430 = pneg %p156
        %p431 = pneg %p153
        %p432 = pneg %p177
        %p433 = pneg %p174
        %p434 = pneg %p198
        %p435 = pneg %p195
        %p436 = pneg %p219
        %p437 = pneg %p216
        %p438 = pneg %p240
        %p439 = pneg %p237
        %p440 = pneg %p268
        %p441 = pneg %p265
        %s442 = sand.u32 %s255, 1
        %s443 = scalar_lea.sflag [#allocation4], %s442
        %s444 = sand.u32 %s255, 1
        %s445 = smul.addr %s444, 4
        %s446 = scalar_lea.vmem [#allocation11], %s445
        %s448 = smul.u32 %s35, 8
        %v449 = vld [vmem:[%s388] sm:$0xf]
        %v450 = vld [vmem:[#allocation7] sm:$0xff]
        %v451 = vld [vmem:[#allocation7 + $0x8] sm:$0xff]
        %v452 = vld [vmem:[#allocation7 + $0x10] sm:$0xff]
        %v453 = vld [vmem:[#allocation7 + $0x18] sm:$0xff]
        %v454 = vld [vmem:[#allocation7 + $0x20] sm:$0xff]
        %v455 = vld [vmem:[#allocation7 + $0x28] sm:$0xff]
        %v456 = vld [vmem:[#allocation7 + $0x30] sm:$0xff]
        %v457 = vld [vmem:[#allocation7 + $0x38] sm:$0xff]
        %v458 = vld [vmem:[#allocation7 + $0x40] sm:$0xff]
        %v459 = vld [vmem:[#allocation7 + $0x48] sm:$0xff]
        %v460 = vld [vmem:[#allocation7 + $0x50] sm:$0xff]
        %v461 = vld [vmem:[#allocation7 + $0x58] sm:$0xff]
        %v462 = vld [vmem:[#allocation7 + $0x60] sm:$0xff]
        %v463 = vld [vmem:[#allocation7 + $0x68] sm:$0xff]
        %v464 = vld [vmem:[#allocation7 + $0x70] sm:$0xff]
        %v465 = vld [vmem:[#allocation7 + $0x78] sm:$0xff]
        %v482 = vunpack.c.l.b16 %v450
        %v483 = vunpack.c.h.b16 %v450
        %v484 = vunpack.c.l.b16 %v451
        %v485 = vunpack.c.h.b16 %v451
        %v486 = vunpack.c.l.b16 %v452
        %v487 = vunpack.c.h.b16 %v452
        %v488 = vunpack.c.l.b16 %v453
        %v489 = vunpack.c.h.b16 %v453
        %v490 = vunpack.c.l.b16 %v454
        %v491 = vunpack.c.h.b16 %v454
        %v492 = vunpack.c.l.b16 %v455
        %v493 = vunpack.c.h.b16 %v455
        %v494 = vunpack.c.l.b16 %v456
        %v495 = vunpack.c.h.b16 %v456
        %v496 = vunpack.c.l.b16 %v457
        %v497 = vunpack.c.h.b16 %v457
        %v498 = vunpack.c.l.b16 %v458
        %v499 = vunpack.c.h.b16 %v458
        %v500 = vunpack.c.l.b16 %v459
        %v501 = vunpack.c.h.b16 %v459
        %v502 = vunpack.c.l.b16 %v460
        %v503 = vunpack.c.h.b16 %v460
        %v504 = vunpack.c.l.b16 %v461
        %v505 = vunpack.c.h.b16 %v461
        %v506 = vunpack.c.l.b16 %v462
        %v507 = vunpack.c.h.b16 %v462
        %v508 = vunpack.c.l.b16 %v463
        %v509 = vunpack.c.h.b16 %v463
        %v510 = vunpack.c.l.b16 %v464
        %v511 = vunpack.c.h.b16 %v464
        %v512 = vunpack.c.l.b16 %v465
        %v513 = vunpack.c.h.b16 %v465
        %v514 = vpack.c.b16 %v484, %v482
        %v515 = vpack.c.b16 %v485, %v483
        %v516 = vpack.c.b16 %v488, %v486
        %v517 = vpack.c.b16 %v489, %v487
        %v518 = vpack.c.b16 %v492, %v490
        %v519 = vpack.c.b16 %v493, %v491
        %v520 = vpack.c.b16 %v496, %v494
        %v521 = vpack.c.b16 %v497, %v495
        %v522 = vpack.c.b16 %v500, %v498
        %v523 = vpack.c.b16 %v501, %v499
        %v524 = vpack.c.b16 %v504, %v502
        %v525 = vpack.c.b16 %v505, %v503
        %v526 = vpack.c.b16 %v508, %v506
        %v527 = vpack.c.b16 %v509, %v507
        %v528 = vpack.c.b16 %v512, %v510
        %v529 = vpack.c.b16 %v513, %v511
        %546 = vmatprep.subr.bf16.mxu0 %v529
        %547 = vmatpush1.bf16.msra.mxu0 %v528
        %548 = vmatprep.subr.bf16.mxu0 %v527
        %549 = vmatpush1.bf16.msra.mxu0 %v526
        %550 = vmatprep.subr.bf16.mxu0 %v525
        %551 = vmatpush1.bf16.msra.mxu0 %v524
        %552 = vmatprep.subr.bf16.mxu0 %v523
        %553 = vmatpush1.bf16.msra.mxu0 %v522
        %554 = vmatprep.subr.bf16.mxu0 %v521
        %555 = vmatpush1.bf16.msra.mxu0 %v520
        %556 = vmatprep.subr.bf16.mxu0 %v519
        %557 = vmatpush1.bf16.msra.mxu0 %v518
        %558 = vmatprep.subr.bf16.mxu0 %v517
        %559 = vmatpush1.bf16.msra.mxu0 %v516
        %560 = vmatprep.subr.bf16.mxu0 %v515
        %561 = vmatpush1.bf16.msra.mxu0 %v514
        %562 = vmatprep.subr.bf16.mxu0 0
        %563 = vmatpush2.bf16.msra.mxu0 0
        %564 = vmatprep.subr.bf16.mxu0 0
        %565 = vmatpush2.bf16.msra.mxu0 0
        %566 = vmatprep.subr.bf16.mxu0 0
        %567 = vmatpush2.bf16.msra.mxu0 0
        %568 = vmatprep.subr.bf16.mxu0 0
        %569 = vmatpush2.bf16.msra.mxu0 0
        %570 = vmatprep.subr.bf16.mxu0 0
        %571 = vmatpush2.bf16.msra.mxu0 0
        %572 = vmatprep.subr.bf16.mxu0 0
        %573 = vmatpush2.bf16.msra.mxu0 0
        %574 = vmatprep.subr.bf16.mxu0 0
        %575 = vmatpush2.bf16.msra.mxu0 0
        %576 = vmatprep.subr.bf16.mxu0 0
        %577 = vmatpush2.bf16.msra.mxu0 0
        %578 = vmatprep.mubr.bf16.mxu0 0
        %579 = vmatmul.mubr.bf16.gmra.mxu0 %v449
        %v580 = vpop.f32.mrf.mxu0
        %v581 = vadd.f32 0.0, %v580
        %v582 = vpop.f32.mrf.mxu0
        %v583 = vadd.f32 0.0, %v582
        %v584 = vpop.f32.mrf.mxu0
        %v585 = vpop.f32.mrf.mxu0
        %586 = vdwg.mxu0
        %v587 = vld [vmem:[%s3] sm:$0x1]
        %v589 = vlaneseq
        %v590 = vshrl.u32 %v589, 7
        %v591 = vsub.s32 0, %v590
        %v592 = vrot.slane %v587, %v591
        %v594 = vadd.f32 %v581, %v592
        %v595 = vmax.f32 %v594, 0.0
        %v596 = vld [vmem:[%s4] sm:$0x1]
        %v598 = vlaneseq
        %v599 = vshrl.u32 %v598, 7
        %v600 = vsub.s32 0, %v599
        %v601 = vrot.slane %v596, %v600
        %v603 = vadd.f32 %v583, %v601
        %v604 = vpack.c.bf16 %v603, %v603
        %605 = vst [vmem:[%s446] sm:$0xf] %v604
        %v606 = vrot.slane %v595, 7
        %v607 = vrot.slane %v595, 1
        %v608 = vlaneseq
        %v609 = vshrl.u32 %v608, 7
        %v610 = vld [vmem:[%s396] sm:$0x1]
        %v611 = vld [vmem:[%s3] sm:$0x1]
        %v613 = vlaneseq
        %v614 = vshrl.u32 %v613, 7
        %v615 = vsub.s32 0, %v614
        %v616 = vrot.slane %v611, %v615
        %618 = vmatprep.subr.bf16.mxu0 0
        %619 = vmatpush1.bf16.msra.mxu0 %v528
        %620 = vmatprep.subr.bf16.mxu0 0
        %621 = vmatpush1.bf16.msra.mxu0 %v526
        %622 = vmatprep.subr.bf16.mxu0 0
        %623 = vmatpush1.bf16.msra.mxu0 %v524
        %624 = vmatprep.subr.bf16.mxu0 0
        %625 = vmatpush1.bf16.msra.mxu0 %v522
        %626 = vmatprep.subr.bf16.mxu0 0
        %627 = vmatpush1.bf16.msra.mxu0 %v520
        %628 = vmatprep.subr.bf16.mxu0 0
        %629 = vmatpush1.bf16.msra.mxu0 %v518
        %630 = vmatprep.subr.bf16.mxu0 0
        %631 = vmatpush1.bf16.msra.mxu0 %v516
        %632 = vmatprep.subr.bf16.mxu0 0
        %633 = vmatpush1.bf16.msra.mxu0 %v514
        %634 = vmatprep.subr.bf16.mxu0 0
        %635 = vmatpush2.bf16.msra.mxu0 0
        %636 = vmatprep.subr.bf16.mxu0 0
        %637 = vmatpush2.bf16.msra.mxu0 0
        %638 = vmatprep.subr.bf16.mxu0 0
        %639 = vmatpush2.bf16.msra.mxu0 0
        %640 = vmatprep.subr.bf16.mxu0 0
        %641 = vmatpush2.bf16.msra.mxu0 0
        %642 = vmatprep.subr.bf16.mxu0 0
        %643 = vmatpush2.bf16.msra.mxu0 0
        %644 = vmatprep.subr.bf16.mxu0 0
        %645 = vmatpush2.bf16.msra.mxu0 0
        %646 = vmatprep.subr.bf16.mxu0 0
        %647 = vmatpush2.bf16.msra.mxu0 0
        %648 = vmatprep.subr.bf16.mxu0 0
        %649 = vmatpush2.bf16.msra.mxu0 0
        %650 = vmatprep.mubr.bf16.mxu0 0
        %651 = vmatmul.mubr.bf16.gmra.mxu0 %v610
        %v652 = vpop.f32.mrf.mxu0
        %v653 = vadd.f32 %v616, %v652
        %v654 = vpop.f32.mrf.mxu0
        %v655 = vpop.f32.mrf.mxu0
        %v656 = vpop.f32.mrf.mxu0
        %657 = vdwg.mxu0
        %v658 = vmax.f32 %v653, 0.0
        %p659 = scmp.gt.s32.totalorder %s448, 0
        %s660 = scalar_select %p659, 1, 0
        %v661 = vstv %s660
        %vm662 = vcmp.eq.s32.totalorder %v661, 1
        %v663 = vsel %vm662, %v658, 0.0
        %s664 = sadd.s32 %s448, 8
        %p665 = scmp.lt.s32.totalorder %s664, 16
        %s666 = scalar_select %p665, 1, 0
        %v667 = vstv %s666
        %vm668 = vcmp.eq.s32.totalorder %v667, 1
        %v669 = vsel %vm668, %v658, 0.0
        %vm670 = vcmp.eq.s32.totalorder %v609, 0
        %v671 = vsel %vm670, 1, 0
        %vm672 = vcmp.eq.s32.totalorder %v671, 1
        %v673 = vlaneseq
        %v674 = vshrl.u32 %v673, 7
        %v675 = vsub.s32 0, %v674
        %v676 = vrot.slane %v663, %v675
        %v677 = vsel %vm672, %v676, %v606
        %vm678 = vcmp.eq.s32.totalorder %v609, 7
        %v679 = vsel %vm678, 1, 0
        %vm680 = vcmp.eq.s32.totalorder %v679, 1
        %v681 = vlaneseq
        %v682 = vshrl.u32 %v681, 7
        %v683 = vsub.s32 1, %v682
        %v684 = vrot.slane %v669, %v683
        %v685 = vsel %vm680, %v684, %v607
        %v686 = vpack.c.bf16 %v677, %v677
        %v687 = vld [vmem:[#allocation8] sm:$0xf]
        %v688 = vld [vmem:[#allocation8 + $0x4] sm:$0xf]
        %v689 = vld [vmem:[#allocation8 + $0x8] sm:$0xf]
        %v690 = vld [vmem:[#allocation8 + $0xc] sm:$0xf]
        %v691 = vld [vmem:[#allocation8 + $0x10] sm:$0xf]
        %v692 = vld [vmem:[#allocation8 + $0x14] sm:$0xf]
        %v693 = vld [vmem:[#allocation8 + $0x18] sm:$0xf]
        %v694 = vld [vmem:[#allocation8 + $0x1c] sm:$0xf]
        %v695 = vld [vmem:[#allocation8 + $0x20] sm:$0xf]
        %v696 = vld [vmem:[#allocation8 + $0x24] sm:$0xf]
        %v697 = vld [vmem:[#allocation8 + $0x28] sm:$0xf]
        %v698 = vld [vmem:[#allocation8 + $0x2c] sm:$0xf]
        %v699 = vld [vmem:[#allocation8 + $0x30] sm:$0xf]
        %v700 = vld [vmem:[#allocation8 + $0x34] sm:$0xf]
        %v701 = vld [vmem:[#allocation8 + $0x38] sm:$0xf]
        %v702 = vld [vmem:[#allocation8 + $0x3c] sm:$0xf]
        %v703 = vpack.c.bf16 %v595, %v595
        %s704 = scalar_lea.vmem [#allocation8], 64
        %v705 = vld [vmem:[%s704] sm:$0xf]
        %v706 = vld [vmem:[%s704 + $0x4] sm:$0xf]
        %v707 = vld [vmem:[%s704 + $0x8] sm:$0xf]
        %v708 = vld [vmem:[%s704 + $0xc] sm:$0xf]
        %v709 = vld [vmem:[%s704 + $0x10] sm:$0xf]
        %v710 = vld [vmem:[%s704 + $0x14] sm:$0xf]
        %v711 = vld [vmem:[%s704 + $0x18] sm:$0xf]
        %v712 = vld [vmem:[%s704 + $0x1c] sm:$0xf]
        %v713 = vld [vmem:[%s704 + $0x20] sm:$0xf]
        %v714 = vld [vmem:[%s704 + $0x24] sm:$0xf]
        %v715 = vld [vmem:[%s704 + $0x28] sm:$0xf]
        %v716 = vld [vmem:[%s704 + $0x2c] sm:$0xf]
        %v717 = vld [vmem:[%s704 + $0x30] sm:$0xf]
        %v718 = vld [vmem:[%s704 + $0x34] sm:$0xf]
        %v719 = vld [vmem:[%s704 + $0x38] sm:$0xf]
        %v720 = vld [vmem:[%s704 + $0x3c] sm:$0xf]
        %v737 = vunpack.c.l.b16 %v705
        %v738 = vunpack.c.l.b16 %v706
        %v739 = vunpack.c.l.b16 %v707
        %v740 = vunpack.c.l.b16 %v708
        %v741 = vunpack.c.l.b16 %v709
        %v742 = vunpack.c.l.b16 %v710
        %v743 = vunpack.c.l.b16 %v711
        %v744 = vunpack.c.l.b16 %v712
        %v745 = vunpack.c.l.b16 %v713
        %v746 = vunpack.c.l.b16 %v714
        %v747 = vunpack.c.l.b16 %v715
        %v748 = vunpack.c.l.b16 %v716
        %v749 = vunpack.c.l.b16 %v717
        %v750 = vunpack.c.l.b16 %v718
        %v751 = vunpack.c.l.b16 %v719
        %v752 = vunpack.c.l.b16 %v720
        %v753 = vpack.c.b16 %v738, %v737
        %v754 = vpack.c.b16 %v740, %v739
        %v755 = vpack.c.b16 %v742, %v741
        %v756 = vpack.c.b16 %v744, %v743
        %v757 = vpack.c.b16 %v746, %v745
        %v758 = vpack.c.b16 %v748, %v747
        %v759 = vpack.c.b16 %v750, %v749
        %v760 = vpack.c.b16 %v752, %v751
        %769 = vmatprep.subr.bf16.mxu0 0
        %770 = vmatpush1.bf16.msra.mxu0 %v760
        %771 = vmatprep.subr.bf16.mxu0 0
        %772 = vmatpush1.bf16.msra.mxu0 %v759
        %773 = vmatprep.subr.bf16.mxu0 0
        %774 = vmatpush1.bf16.msra.mxu0 %v758
        %775 = vmatprep.subr.bf16.mxu0 0
        %776 = vmatpush1.bf16.msra.mxu0 %v757
        %777 = vmatprep.subr.bf16.mxu0 0
        %778 = vmatpush1.bf16.msra.mxu0 %v756
        %779 = vmatprep.subr.bf16.mxu0 0
        %780 = vmatpush1.bf16.msra.mxu0 %v755
        %781 = vmatprep.subr.bf16.mxu0 0
        %782 = vmatpush1.bf16.msra.mxu0 %v754
        %783 = vmatprep.subr.bf16.mxu0 0
        %784 = vmatpush1.bf16.msra.mxu0 %v753
        %785 = vmatprep.subr.bf16.mxu0 0
        %786 = vmatpush2.bf16.msra.mxu0 0
        %787 = vmatprep.subr.bf16.mxu0 0
        %788 = vmatpush2.bf16.msra.mxu0 0
        %789 = vmatprep.subr.bf16.mxu0 0
        %790 = vmatpush2.bf16.msra.mxu0 0
        %791 = vmatprep.subr.bf16.mxu0 0
        %792 = vmatpush2.bf16.msra.mxu0 0
        %793 = vmatprep.subr.bf16.mxu0 0
        %794 = vmatpush2.bf16.msra.mxu0 0
        %795 = vmatprep.subr.bf16.mxu0 0
        %796 = vmatpush2.bf16.msra.mxu0 0
        %797 = vmatprep.subr.bf16.mxu0 0
        %798 = vmatpush2.bf16.msra.mxu0 0
        %799 = vmatprep.subr.bf16.mxu0 0
        %800 = vmatpush2.bf16.msra.mxu0 0
        %801 = vmatprep.mubr.bf16.mxu0 0
        %802 = vmatmul.mubr.bf16.gmra.mxu0 %v703
        %v803 = vpop.f32.mrf.mxu0
        %v804 = vadd.f32 0.0, %v803
        %v805 = vpop.f32.mrf.mxu0
        %v806 = vpop.f32.mrf.mxu0
        %v807 = vpop.f32.mrf.mxu0
        %808 = vdwg.mxu0
        %v825 = vunpack.c.l.b16 %v687
        %v826 = vunpack.c.l.b16 %v688
        %v827 = vunpack.c.l.b16 %v689
        %v828 = vunpack.c.l.b16 %v690
        %v829 = vunpack.c.l.b16 %v691
        %v830 = vunpack.c.l.b16 %v692
        %v831 = vunpack.c.l.b16 %v693
        %v832 = vunpack.c.l.b16 %v694
        %v833 = vunpack.c.l.b16 %v695
        %v834 = vunpack.c.l.b16 %v696
        %v835 = vunpack.c.l.b16 %v697
        %v836 = vunpack.c.l.b16 %v698
        %v837 = vunpack.c.l.b16 %v699
        %v838 = vunpack.c.l.b16 %v700
        %v839 = vunpack.c.l.b16 %v701
        %v840 = vunpack.c.l.b16 %v702
        %v841 = vpack.c.b16 %v826, %v825
        %v842 = vpack.c.b16 %v828, %v827
        %v843 = vpack.c.b16 %v830, %v829
        %v844 = vpack.c.b16 %v832, %v831
        %v845 = vpack.c.b16 %v834, %v833
        %v846 = vpack.c.b16 %v836, %v835
        %v847 = vpack.c.b16 %v838, %v837
        %v848 = vpack.c.b16 %v840, %v839
        %857 = vmatprep.subr.bf16.mxu0 0
        %858 = vmatpush1.bf16.msra.mxu0 %v848
        %859 = vmatprep.subr.bf16.mxu0 0
        %860 = vmatpush1.bf16.msra.mxu0 %v847
        %861 = vmatprep.subr.bf16.mxu0 0
        %862 = vmatpush1.bf16.msra.mxu0 %v846
        %863 = vmatprep.subr.bf16.mxu0 0
        %864 = vmatpush1.bf16.msra.mxu0 %v845
        %865 = vmatprep.subr.bf16.mxu0 0
        %866 = vmatpush1.bf16.msra.mxu0 %v844
        %867 = vmatprep.subr.bf16.mxu0 0
        %868 = vmatpush1.bf16.msra.mxu0 %v843
        %869 = vmatprep.subr.bf16.mxu0 0
        %870 = vmatpush1.bf16.msra.mxu0 %v842
        %871 = vmatprep.subr.bf16.mxu0 0
        %872 = vmatpush1.bf16.msra.mxu0 %v841
        %873 = vmatprep.subr.bf16.mxu0 0
        %874 = vmatpush2.bf16.msra.mxu0 0
        %875 = vmatprep.subr.bf16.mxu0 0
        %876 = vmatpush2.bf16.msra.mxu0 0
        %877 = vmatprep.subr.bf16.mxu0 0
        %878 = vmatpush2.bf16.msra.mxu0 0
        %879 = vmatprep.subr.bf16.mxu0 0
        %880 = vmatpush2.bf16.msra.mxu0 0
        %881 = vmatprep.subr.bf16.mxu0 0
        %882 = vmatpush2.bf16.msra.mxu0 0
        %883 = vmatprep.subr.bf16.mxu0 0
        %884 = vmatpush2.bf16.msra.mxu0 0
        %885 = vmatprep.subr.bf16.mxu0 0
        %886 = vmatpush2.bf16.msra.mxu0 0
        %887 = vmatprep.subr.bf16.mxu0 0
        %888 = vmatpush2.bf16.msra.mxu0 0
        %889 = vmatprep.mubr.bf16.mxu0 0
        %890 = vmatmul.mubr.bf16.gmra.mxu0 %v686
        %v891 = vpop.f32.mrf.mxu0
        %v892 = vadd.f32 %v804, %v891
        %v893 = vpop.f32.mrf.mxu0
        %v894 = vpop.f32.mrf.mxu0
        %v895 = vpop.f32.mrf.mxu0
        %896 = vdwg.mxu0
        %v897 = vpack.c.bf16 %v685, %v685
        %s898 = scalar_lea.vmem [#allocation8], 128
        %v899 = vld [vmem:[%s898] sm:$0xf]
        %v900 = vld [vmem:[%s898 + $0x4] sm:$0xf]
        %v901 = vld [vmem:[%s898 + $0x8] sm:$0xf]
        %v902 = vld [vmem:[%s898 + $0xc] sm:$0xf]
        %v903 = vld [vmem:[%s898 + $0x10] sm:$0xf]
        %v904 = vld [vmem:[%s898 + $0x14] sm:$0xf]
        %v905 = vld [vmem:[%s898 + $0x18] sm:$0xf]
        %v906 = vld [vmem:[%s898 + $0x1c] sm:$0xf]
        %v907 = vld [vmem:[%s898 + $0x20] sm:$0xf]
        %v908 = vld [vmem:[%s898 + $0x24] sm:$0xf]
        %v909 = vld [vmem:[%s898 + $0x28] sm:$0xf]
        %v910 = vld [vmem:[%s898 + $0x2c] sm:$0xf]
        %v911 = vld [vmem:[%s898 + $0x30] sm:$0xf]
        %v912 = vld [vmem:[%s898 + $0x34] sm:$0xf]
        %v913 = vld [vmem:[%s898 + $0x38] sm:$0xf]
        %v914 = vld [vmem:[%s898 + $0x3c] sm:$0xf]
        %v931 = vunpack.c.l.b16 %v899
        %v932 = vunpack.c.l.b16 %v900
        %v933 = vunpack.c.l.b16 %v901
        %v934 = vunpack.c.l.b16 %v902
        %v935 = vunpack.c.l.b16 %v903
        %v936 = vunpack.c.l.b16 %v904
        %v937 = vunpack.c.l.b16 %v905
        %v938 = vunpack.c.l.b16 %v906
        %v939 = vunpack.c.l.b16 %v907
        %v940 = vunpack.c.l.b16 %v908
        %v941 = vunpack.c.l.b16 %v909
        %v942 = vunpack.c.l.b16 %v910
        %v943 = vunpack.c.l.b16 %v911
        %v944 = vunpack.c.l.b16 %v912
        %v945 = vunpack.c.l.b16 %v913
        %v946 = vunpack.c.l.b16 %v914
        %v947 = vpack.c.b16 %v932, %v931
        %v948 = vpack.c.b16 %v934, %v933
        %v949 = vpack.c.b16 %v936, %v935
        %v950 = vpack.c.b16 %v938, %v937
        %v951 = vpack.c.b16 %v940, %v939
        %v952 = vpack.c.b16 %v942, %v941
        %v953 = vpack.c.b16 %v944, %v943
        %v954 = vpack.c.b16 %v946, %v945
        %963 = vmatprep.subr.bf16.mxu0 0
        %964 = vmatpush1.bf16.msra.mxu0 %v954
        %965 = vmatprep.subr.bf16.mxu0 0
        %966 = vmatpush1.bf16.msra.mxu0 %v953
        %967 = vmatprep.subr.bf16.mxu0 0
        %968 = vmatpush1.bf16.msra.mxu0 %v952
        %969 = vmatprep.subr.bf16.mxu0 0
        %970 = vmatpush1.bf16.msra.mxu0 %v951
        %971 = vmatprep.subr.bf16.mxu0 0
        %972 = vmatpush1.bf16.msra.mxu0 %v950
        %973 = vmatprep.subr.bf16.mxu0 0
        %974 = vmatpush1.bf16.msra.mxu0 %v949
        %975 = vmatprep.subr.bf16.mxu0 0
        %976 = vmatpush1.bf16.msra.mxu0 %v948
        %977 = vmatprep.subr.bf16.mxu0 0
        %978 = vmatpush1.bf16.msra.mxu0 %v947
        %979 = vmatprep.subr.bf16.mxu0 0
        %980 = vmatpush2.bf16.msra.mxu0 0
        %981 = vmatprep.subr.bf16.mxu0 0
        %982 = vmatpush2.bf16.msra.mxu0 0
        %983 = vmatprep.subr.bf16.mxu0 0
        %984 = vmatpush2.bf16.msra.mxu0 0
        %985 = vmatprep.subr.bf16.mxu0 0
        %986 = vmatpush2.bf16.msra.mxu0 0
        %987 = vmatprep.subr.bf16.mxu0 0
        %988 = vmatpush2.bf16.msra.mxu0 0
        %989 = vmatprep.subr.bf16.mxu0 0
        %990 = vmatpush2.bf16.msra.mxu0 0
        %991 = vmatprep.subr.bf16.mxu0 0
        %992 = vmatpush2.bf16.msra.mxu0 0
        %993 = vmatprep.subr.bf16.mxu0 0
        %994 = vmatpush2.bf16.msra.mxu0 0
        %995 = vmatprep.mubr.bf16.mxu0 0
        %996 = vmatmul.mubr.bf16.gmra.mxu0 %v897
        %v997 = vpop.f32.mrf.mxu0
        %v998 = vadd.f32 0.0, %v997
        %v999 = vpop.f32.mrf.mxu0
        %v1000 = vpop.f32.mrf.mxu0
        %v1001 = vpop.f32.mrf.mxu0
        %1002 = vdwg.mxu0
        %v1003 = vadd.f32 %v892, %v998
        %v1004 = vld [vmem:[%s6] sm:$0x1]
        %v1006 = vlaneseq
        %v1007 = vshrl.u32 %v1006, 7
        %v1008 = vsub.s32 0, %v1007
        %v1009 = vrot.slane %v1004, %v1008
        %v1011 = vadd.f32 %v1003, %v1009
        %v1012 = vmax.f32 %v1011, 0.0
        %v1013 = vpack.c.bf16 %v1012, %v1012
        %v1014 = vld [vmem:[#allocation10] sm:$0xf]
        %v1015 = vld [vmem:[#allocation10 + $0x4] sm:$0xf]
        %v1016 = vld [vmem:[#allocation10 + $0x8] sm:$0xf]
        %v1017 = vld [vmem:[#allocation10 + $0xc] sm:$0xf]
        %v1018 = vld [vmem:[#allocation10 + $0x10] sm:$0xf]
        %v1019 = vld [vmem:[#allocation10 + $0x14] sm:$0xf]
        %v1020 = vld [vmem:[#allocation10 + $0x18] sm:$0xf]
        %v1021 = vld [vmem:[#allocation10 + $0x1c] sm:$0xf]
        %v1022 = vld [vmem:[#allocation10 + $0x20] sm:$0xf]
        %v1023 = vld [vmem:[#allocation10 + $0x24] sm:$0xf]
        %v1024 = vld [vmem:[#allocation10 + $0x28] sm:$0xf]
        %v1025 = vld [vmem:[#allocation10 + $0x2c] sm:$0xf]
        %v1026 = vld [vmem:[#allocation10 + $0x30] sm:$0xf]
        %v1027 = vld [vmem:[#allocation10 + $0x34] sm:$0xf]
        %v1028 = vld [vmem:[#allocation10 + $0x38] sm:$0xf]
        %v1029 = vld [vmem:[#allocation10 + $0x3c] sm:$0xf]
        %v1030 = vld [vmem:[%s8] sm:$0x1]
        %v1032 = vlaneseq
        %v1033 = vshrl.u32 %v1032, 7
        %v1034 = vsub.s32 0, %v1033
        %v1035 = vrot.slane %v1030, %v1034
        %v1053 = vunpack.c.l.b16 %v1014
        %v1054 = vunpack.c.l.b16 %v1015
        %v1055 = vunpack.c.l.b16 %v1016
        %v1056 = vunpack.c.l.b16 %v1017
        %v1057 = vunpack.c.l.b16 %v1018
        %v1058 = vunpack.c.l.b16 %v1019
        %v1059 = vunpack.c.l.b16 %v1020
        %v1060 = vunpack.c.l.b16 %v1021
        %v1061 = vunpack.c.l.b16 %v1022
        %v1062 = vunpack.c.l.b16 %v1023
        %v1063 = vunpack.c.l.b16 %v1024
        %v1064 = vunpack.c.l.b16 %v1025
        %v1065 = vunpack.c.l.b16 %v1026
        %v1066 = vunpack.c.l.b16 %v1027
        %v1067 = vunpack.c.l.b16 %v1028
        %v1068 = vunpack.c.l.b16 %v1029
        %v1069 = vpack.c.b16 %v1054, %v1053
        %v1070 = vpack.c.b16 %v1056, %v1055
        %v1071 = vpack.c.b16 %v1058, %v1057
        %v1072 = vpack.c.b16 %v1060, %v1059
        %v1073 = vpack.c.b16 %v1062, %v1061
        %v1074 = vpack.c.b16 %v1064, %v1063
        %v1075 = vpack.c.b16 %v1066, %v1065
        %v1076 = vpack.c.b16 %v1068, %v1067
        %1085 = vmatprep.subr.bf16.mxu0 0
        %1086 = vmatpush1.bf16.msra.mxu0 %v1076
        %1087 = vmatprep.subr.bf16.mxu0 0
        %1088 = vmatpush1.bf16.msra.mxu0 %v1075
        %1089 = vmatprep.subr.bf16.mxu0 0
        %1090 = vmatpush1.bf16.msra.mxu0 %v1074
        %1091 = vmatprep.subr.bf16.mxu0 0
        %1092 = vmatpush1.bf16.msra.mxu0 %v1073
        %1093 = vmatprep.subr.bf16.mxu0 0
        %1094 = vmatpush1.bf16.msra.mxu0 %v1072
        %1095 = vmatprep.subr.bf16.mxu0 0
        %1096 = vmatpush1.bf16.msra.mxu0 %v1071
        %1097 = vmatprep.subr.bf16.mxu0 0
        %1098 = vmatpush1.bf16.msra.mxu0 %v1070
        %1099 = vmatprep.subr.bf16.mxu0 0
        %1100 = vmatpush1.bf16.msra.mxu0 %v1069
        %1101 = vmatprep.subr.bf16.mxu0 0
        %1102 = vmatpush2.bf16.msra.mxu0 0
        %1103 = vmatprep.subr.bf16.mxu0 0
        %1104 = vmatpush2.bf16.msra.mxu0 0
        %1105 = vmatprep.subr.bf16.mxu0 0
        %1106 = vmatpush2.bf16.msra.mxu0 0
        %1107 = vmatprep.subr.bf16.mxu0 0
        %1108 = vmatpush2.bf16.msra.mxu0 0
        %1109 = vmatprep.subr.bf16.mxu0 0
        %1110 = vmatpush2.bf16.msra.mxu0 0
        %1111 = vmatprep.subr.bf16.mxu0 0
        %1112 = vmatpush2.bf16.msra.mxu0 0
        %1113 = vmatprep.subr.bf16.mxu0 0
        %1114 = vmatpush2.bf16.msra.mxu0 0
        %1115 = vmatprep.subr.bf16.mxu0 0
        %1116 = vmatpush2.bf16.msra.mxu0 0
        %1117 = vmatprep.mubr.bf16.mxu0 0
        %1118 = vmatmul.mubr.bf16.gmra.mxu0 %v1013
        %v1119 = vpop.f32.mrf.mxu0
        %v1120 = vadd.f32 %v1035, %v1119
        %v1121 = vpop.f32.mrf.mxu0
        %v1122 = vpop.f32.mrf.mxu0
        %v1123 = vpop.f32.mrf.mxu0
        %1124 = vdwg.mxu0
        %v1125 = vld [vmem:[%s446] sm:$0xf]
        %v1126 = vunpack.c.l.bf16 %v1125
        %v1127 = vadd.f32 %v1120, %v1126
        %v1128 = vmax.f32 %v1127, 0.0
        %v1129 = vpack.c.bf16 %v1128, %v1128
        %1130 = vst [vmem:[%s446] sm:$0xf] %v1129
        %s1131 = sand.u32 %s255, 1
        %s1132 = scalar_lea.sflag [#allocation4], %s1131
        %s1133 = sand.u32 %s255, 1
        %s1134 = smul.addr %s1133, 4
        %s1135 = scalar_lea.vmem [#allocation11], %s1134
        // Predicated region
        $region77: #{tpu_custom_call.1} parent=55 // pred_check
          %p1136 = pneg %p265
        $region78: #{tpu_custom_call.1} parent=55 // pred_check_branch
          %1138 = sbr.rel (%p1136) target = $region80
        $region79: #{tpu_custom_call.1} parent=55 // pred_region
          %s1140 = ssub.s32 64, 64
          %1141 = vsyncadd %s1132, %s1140
          %s1142 = smul.addr %s34, 2
          %s1143 = sadd.s32 %s35, %s1142
          %s1144 = smul.addr %s1143, 64
          %s1145 = scalar_lea.hbm %s9, %s1144
          %s1147 = sshll.u32 %s1135, 4
          %s1148 = int_to_ptr.vmem [resolvable:$true] %s1147
          %1150 = dma.vmem_to_hbm [thread:$0]  %s1148, 64, %s1145, %s1132
        $region80: #{tpu_custom_call.1} parent=55 // pred_fallthru
          _
      $region56: #{tpu_custom_call.1} parent=5 // pred_fallthru
        _
      %p1151 = scmp.le.s32.totalorder 2, %s25
      // Predicated region
      $region81: #{tpu_custom_call.1} parent=5 // pred_check
        %p1152 = pneg %p1151
      $region82: #{tpu_custom_call.1} parent=5 // pred_check_branch
        %1154 = sbr.rel (%p1152) target = $region84
      $region83: #{tpu_custom_call.1} parent=5 // pred_region
        %s1155 = ssub.s32 %s25, 2
        // Predicated region
        $region85: #{tpu_custom_call.1} parent=83 // pred_check
          %p1156 = pneg %p271
        $region86: #{tpu_custom_call.1} parent=83 // pred_check_branch
          %1158 = sbr.rel (%p1156) target = $region88
        $region87: #{tpu_custom_call.1} parent=83 // pred_region
          %s1159 = sand.u32 %s256, 1
          %s1160 = scalar_lea.sflag [#allocation4], %s1159
          %s1161 = sand.u32 %s256, 1
          %s1162 = smul.addr %s1161, 4
          %s1163 = scalar_lea.vmem [#allocation11], %s1162
          %1164 = dma.done %s1160, 64
        $region88: #{tpu_custom_call.1} parent=83 // pred_fallthru
          _
      $region84: #{tpu_custom_call.1} parent=5 // pred_fallthru
        _
    $region6: #{tpu_custom_call.1} parent=1 // loop_footer
      %s29 = sadd.s32 1, %s25
    $region7: #{tpu_custom_call.1} parent=1 // loop_footer_branch
      %24 = sbr.rel target = $region3
    $region8: #{tpu_custom_call.1} parent=1 // loop_exit
      _
    %1165 = vsyncpa [#allocation3], 1
    %s1166 = scalar_lea.sflag [#allocation3], 1
    %1167 = vsyncpa %s1166, 1
    %1168 = vsyncpa [#allocation6], 1
    %s1169 = scalar_lea.sflag [#allocation6], 1
    %1170 = vsyncpa %s1169, 1
    %1171 = vsyncpa [#allocation9], 1
    %1172 = vsyncpa [#allocation4], 1
    %s1173 = scalar_lea.sflag [#allocation4], 1
    %1174 = vsyncpa %s1173, 1

</llo_original>
